<compile_context>
chip_gen: v7x
topology: tpu7x:2x2x1
jax: 0.10.0
libtpu: 0.0.40
codegen_flags: <defaults>
</compile_context>

<pallas_src>
import math

import jax
import jax.numpy as jnp
import numpy as np
from jax.experimental import pallas as pl
from jax.experimental.pallas import tpu as pltpu


# ----------------------------------------------------------------------------
# Pallas kernels
# ----------------------------------------------------------------------------
def conv_relu_pool_kernel(p_ref, w_ref, b_ref, o_ref):
    """conv1 for a block of TB images: one lane-dense dot + fused 2x2 maxpool/ReLU.

    p_ref: (1, CKK, 4*TB*NP)  im2col patches, columns ordered (pool_offset d, image b, pos s)
    w_ref: (COUT, CKK)        conv weight reshaped
    b_ref: (COUT, 1)          bias
    o_ref: (1, COUT, TB*NP)   pooled + biased + ReLU'd output (lane-dense)
    """
    m = o_ref.shape[-1]  # TB*NP columns per pool-offset slab
    y = jnp.dot(w_ref[...], p_ref[0], preferred_element_type=jnp.float32)
    z = jnp.maximum(
        jnp.maximum(y[:, 0:m], y[:, m:2 * m]),
        jnp.maximum(y[:, 2 * m:3 * m], y[:, 3 * m:4 * m]),
    )
    o_ref[0] = jnp.maximum(z + b_ref[...], 0.0)


def conv2_mlp_kernel(p_ref, w2t_ref, b2_ref, a1_ref, fb1_ref, a2_ref, fb2_ref,
                     a3_ref, fb3_ref, o_ref):
    """Fused conv2 + 2x2 maxpool + ReLU + flatten + fc1 + fc2 + fc3 for one image block.

    p_ref : (1, 4*NP2*TB, CKK2)  conv2 im2col patches, rows ordered (d, s, b)
    w2t   : (CKK2, C2)           conv2 weight transposed ; b2: (1, C2)
    a1    : (NP2*C2, H1)         fc1 weight with input features permuted to (s, c) order
    a2    : (H1, H2), a3: (H2, NOUT), fb*: (1, ...)
    o_ref : (1, TB, NOUT)
    """
    tb = o_ref.shape[1]
    rows = p_ref.shape[1]
    m = rows // 4                 # NP2*TB rows per pool-offset slab
    np2 = m // tb                 # pooled spatial positions (4*4 = 16)

    y = jnp.dot(p_ref[0], w2t_ref[...], preferred_element_type=jnp.float32)
    z = jnp.maximum(
        jnp.maximum(y[0:m], y[m:2 * m]),
        jnp.maximum(y[2 * m:3 * m], y[3 * m:4 * m]),
    )
    z = jnp.maximum(z + b2_ref[...], 0.0)   # (NP2*TB, C2), rows ordered (s, b)

    # Flatten: image b's features live in rows {s*TB + b}.  Concatenating the per-s
    # row blocks along lanes yields (TB, NP2*C2) with feature order (s, c); a1 was
    # pre-permuted in the wrapper to match (PyTorch's order is (c, s)).
    x = jnp.concatenate([z[s * tb:(s + 1) * tb, :] for s in range(np2)], axis=1)

    h = jnp.maximum(
        jnp.dot(x, a1_ref[...], preferred_element_type=jnp.float32) + fb1_ref[...], 0.0)
    h = jnp.maximum(
        jnp.dot(h, a2_ref[...], preferred_element_type=jnp.float32) + fb2_ref[...], 0.0)
    o_ref[0] = jnp.dot(h, a3_ref[...], preferred_element_type=jnp.float32) + fb3_ref[...]


# ----------------------------------------------------------------------------
# Wrappers (XLA glue: im2col, layout shuffles, pallas_call plumbing)
# ----------------------------------------------------------------------------
def im2col_pooled(x, k, pool=2):
    """x: (B, C, H, W) -> (B, pool*pool, C*k*k, PH*PW). Feature order (c, kh, kw)."""
    B, C, H, W = x.shape
    OH, OW = H - k + 1, W - k + 1
    cols = jnp.stack(
        [x[:, :, kh:kh + OH, kw:kw + OW] for kh in range(k) for kw in range(k)],
        axis=2)                                    # (B, C, k*k, OH, OW)
    cols = cols.reshape(B, C * k * k, OH, OW)
    slabs = jnp.stack(
        [cols[:, :, dh::pool, dw::pool] for dh in range(pool) for dw in range(pool)],
        axis=1)                                    # (B, 4, C*k*k, PH, PW)
    return slabs.reshape(B, pool * pool, C * k * k, (OH // pool) * (OW // pool))


def conv_relu_pool(patches, w2d, b2d, tb):
    """patches: (B, 4, CKK, NP) -> pooled/relu'd conv output (B, COUT, PH, PW)."""
    B, P4, CKK, NP = patches.shape
    nblk = B // tb
    cout = w2d.shape[0]
    # Fold batch + pool offsets into the matmul N dim, pool-offset slabs outermost.
    p = patches.reshape(nblk, tb, P4, CKK, NP).transpose(0, 3, 2, 1, 4)
    p = p.reshape(nblk, CKK, P4 * tb * NP)         # columns ordered (d, b, s)
    out = pl.pallas_call(
        conv_relu_pool_kernel,
        out_shape=jax.ShapeDtypeStruct((nblk, cout, tb * NP), jnp.float32),
        grid=(nblk,),
        in_specs=[
            pl.BlockSpec((1, CKK, P4 * tb * NP), lambda i: (i, 0, 0)),
            pl.BlockSpec((cout, CKK), lambda i: (0, 0)),
            pl.BlockSpec((cout, 1), lambda i: (0, 0)),
        ],
        out_specs=pl.BlockSpec((1, cout, tb * NP), lambda i: (i, 0, 0)),
        compiler_params=pltpu.CompilerParams(
            dimension_semantics=("parallel",),
            vmem_limit_bytes=64 * 1024 * 1024),
    )(p, w2d, b2d)
    ph = int(math.isqrt(NP))
    return (out.reshape(nblk, cout, tb, NP)
               .transpose(0, 2, 1, 3)
               .reshape(B, cout, ph, NP // ph))


def conv2_mlp(patches, w2t, b2, a1, fb1, a2, fb2, a3, fb3, tb):
    """patches: (B, 4, CKK2, NP2) -> logits (B, NOUT), conv2+pool+relu+MLP fused."""
    B, P4, CKK2, NP2 = patches.shape
    nblk = B // tb
    nout = a3.shape[1]
    # Rows ordered (d, s, b): pool-offset slabs outermost, spatial pos, then image.
    p = patches.reshape(nblk, tb, P4, CKK2, NP2).transpose(0, 2, 4, 1, 3)
    p = p.reshape(nblk, P4 * NP2 * tb, CKK2)
    out = pl.pallas_call(
        conv2_mlp_kernel,
        out_shape=jax.ShapeDtypeStruct((nblk, tb, nout), jnp.float32),
        grid=(nblk,),
        in_specs=[
            pl.BlockSpec((1, P4 * NP2 * tb, CKK2), lambda i: (i, 0, 0)),
            pl.BlockSpec(w2t.shape, lambda i: (0, 0)),
            pl.BlockSpec(b2.shape, lambda i: (0, 0)),
            pl.BlockSpec(a1.shape, lambda i: (0, 0)),
            pl.BlockSpec(fb1.shape, lambda i: (0, 0)),
            pl.BlockSpec(a2.shape, lambda i: (0, 0)),
            pl.BlockSpec(fb2.shape, lambda i: (0, 0)),
            pl.BlockSpec(a3.shape, lambda i: (0, 0)),
            pl.BlockSpec(fb3.shape, lambda i: (0, 0)),
        ],
        out_specs=pl.BlockSpec((1, tb, nout), lambda i: (i, 0, 0)),
        compiler_params=pltpu.CompilerParams(
            dimension_semantics=("parallel",),
            vmem_limit_bytes=64 * 1024 * 1024),
    )(p, w2t, b2, a1, fb1, a2, fb2, a3, fb3)
    return out.reshape(B, nout)


def net_forward(x, params, tb_max=32):
    # TB images per grid step.  conv1 patch block is ~57.6 KB/image (f32) and Pallas
    # double-buffers inputs, so TB<=128 stays well under VMEM on all generations
    # (v7x: 64 MiB) with the 64 MiB vmem_limit set above; default 32 is conservative.
    (w1, b1, w2, b2, fw1, fb1, fw2, fb2, fw3, fb3) = params
    B = x.shape[0]
    tb = min(tb_max, B)
    b_pad = ((B + tb - 1) // tb) * tb
    if b_pad != B:
        x = jnp.pad(x, ((0, b_pad - B), (0, 0), (0, 0), (0, 0)))

    # conv1 (1->6, 5x5) + relu + 2x2 maxpool : 28x28 -> 24x24 -> 12x12
    p1 = im2col_pooled(x, 5)                                         # (B, 4, 25, 144)
    h1 = conv_relu_pool(p1, w1.reshape(6, 25), b1.reshape(6, 1), tb)  # (B, 6, 12, 12)

    # conv2 (6->16, 5x5) + relu + 2x2 maxpool + flatten + fc1/fc2/fc3 (fused kernel)
    p2 = im2col_pooled(h1, 5)                                        # (B, 4, 150, 16)
    c2, np2 = 16, 16
    # fc1 weight: permute input features from PyTorch's (c, s) flatten order to the
    # kernel's (s, c) order, and transpose to (in, out).
    a1 = (fw1.reshape(fw1.shape[0], c2, np2)
             .transpose(2, 1, 0)
             .reshape(np2 * c2, fw1.shape[0]))
    logits = conv2_mlp(
        p2,
        w2.reshape(16, 150).T, b2.reshape(1, -1),
        a1, fb1.reshape(1, -1),
        fw2.T, fb2.reshape(1, -1),
        fw3.T, fb3.reshape(1, -1),
        tb,
    )
    return logits[:B]


# ----------------------------------------------------------------------------
# Deterministic parameter init (PyTorch-like uniform(-1/sqrt(fan_in), +))
# ----------------------------------------------------------------------------
def init_params(key):
    def uinit(k, shape, fan_in):
        bound = 1.0 / math.sqrt(fan_in)
        return jax.random.uniform(k, shape, jnp.float32, -bound, bound)

    ks = jax.random.split(key, 10)
    w1 = uinit(ks[0], (6, 1, 5, 5), 1 * 5 * 5)
    b1 = uinit(ks[1], (6,), 1 * 5 * 5)
    w2 = uinit(ks[2], (16, 6, 5, 5), 6 * 5 * 5)
    b2 = uinit(ks[3], (16,), 6 * 5 * 5)
    fw1 = uinit(ks[4], (120, 256), 256)
    fb1 = uinit(ks[5], (120,), 256)
    fw2 = uinit(ks[6], (84, 120), 120)
    fb2 = uinit(ks[7], (84,), 120)
    fw3 = uinit(ks[8], (10, 84), 84)
    fb3 = uinit(ks[9], (10,), 84)
    return (w1, b1, w2, b2, fw1, fb1, fw2, fb2, fw3, fb3)


# ----------------------------------------------------------------------------
# Pure-JAX reference (numerical sanity check)
# ----------------------------------------------------------------------------
def reference_forward(x, params):
    (w1, b1, w2, b2, fw1, fb1, fw2, fb2, fw3, fb3) = params

    def conv(x, w, b):
        y = jax.lax.conv_general_dilated(
            x, w, (1, 1), "VALID",
            dimension_numbers=("NCHW", "OIHW", "NCHW"),
            precision=jax.lax.Precision.HIGHEST,
        )
        return y + b.reshape(1, -1, 1, 1)

    def pool(x):
        return jax.lax.reduce_window(
            x, -jnp.inf, jax.lax.max, (1, 1, 2, 2), (1, 1, 2, 2), "VALID"
        )

    y = pool(jax.nn.relu(conv(x, w1, b1)))
    y = pool(jax.nn.relu(conv(y, w2, b2)))
    y = y.reshape(x.shape[0], -1)
    y = jax.nn.relu(jnp.dot(y, fw1.T, precision=jax.lax.Precision.HIGHEST) + fb1)
    y = jax.nn.relu(jnp.dot(y, fw2.T, precision=jax.lax.Precision.HIGHEST) + fb2)
    return jnp.dot(y, fw3.T, precision=jax.lax.Precision.HIGHEST) + fb3


if __name__ == "__main__":
    key = jax.random.PRNGKey(0)
    kx, kp = jax.random.split(key)
    x = jax.random.normal(kx, (2, 1, 28, 28), dtype=jnp.float32)  # NCHW, MNIST-sized
    params = init_params(kp)

    out = jax.jit(net_forward)(x, params)
    out = jax.block_until_ready(out)
    assert out.shape == (2, 10) and out.dtype == jnp.float32

    ref = reference_forward(x, params)
    np.testing.assert_allclose(np.asarray(out), np.asarray(ref), rtol=2e-3, atol=2e-3)

    print("KERNEL_OK")
</pallas_src>

<mosaic_0001>
module attributes {stable_mosaic.version = 11 : i64} {
  func.func @conv_relu_pool_kernel(%arg0: i32, %arg1: memref<1x25x1152xf32, #tpu.memory_space<vmem>>, %arg2: memref<6x25xf32, #tpu.memory_space<vmem>>, %arg3: memref<6x1xf32, #tpu.memory_space<vmem>>, %arg4: memref<1x6x288xf32, #tpu.memory_space<vmem>>) attributes {dimension_semantics = [#tpu.dimension_semantics<parallel>], iteration_bounds = array<i64: 1>, scalar_prefetch = 0 : i64, scratch_operands = 0 : i64, tpu.core_type = #tpu.core_type<tc>, window_params = [{transform_indices = @transform_0, window_bounds = array<i64: 1, 25, 1152>}, {pipeline_mode = #tpu.pipeline_mode<synchronous>, transform_indices = @transform_1, window_bounds = array<i64: 6, 25>}, {pipeline_mode = #tpu.pipeline_mode<synchronous>, transform_indices = @transform_2, window_bounds = array<i64: 6, 1>}, {transform_indices = @transform_3, window_bounds = array<i64: 1, 6, 288>}]} {
    %c0 = arith.constant 0 : index
    %c0_0 = arith.constant 0 : index
    %0 = vector.load %arg2[%c0, %c0_0] : memref<6x25xf32, #tpu.memory_space<vmem>>, vector<6x25xf32>
    %c0_1 = arith.constant 0 : index
    %c0_2 = arith.constant 0 : index
    %c0_3 = arith.constant 0 : index
    %1 = vector.load %arg1[%c0_1, %c0_2, %c0_3] : memref<1x25x1152xf32, #tpu.memory_space<vmem>>, vector<1x25x1152xf32>
    %2 = vector.shape_cast %1 : vector<1x25x1152xf32> to vector<25x1152xf32>
    %cst = arith.constant dense<0.000000e+00> : vector<6x1152xf32>
    %3 = tpu.matmul %0, %2, %cst {dimension_numbers = #tpu.dot_dimension_numbers<[1], [0], [0], [1], [0, 0, 1, 1], [], []>} : vector<6x25xf32>, vector<25x1152xf32>, vector<6x1152xf32> -> vector<6x1152xf32>
    %4 = vector.extract_strided_slice %3 {offsets = [0, 0], sizes = [6, 288], strides = [1, 1]} : vector<6x1152xf32> to vector<6x288xf32>
    %5 = vector.extract_strided_slice %3 {offsets = [0, 288], sizes = [6, 288], strides = [1, 1]} : vector<6x1152xf32> to vector<6x288xf32>
    %6 = arith.maximumf %4, %5 : vector<6x288xf32>
    %7 = vector.extract_strided_slice %3 {offsets = [0, 576], sizes = [6, 288], strides = [1, 1]} : vector<6x1152xf32> to vector<6x288xf32>
    %8 = vector.extract_strided_slice %3 {offsets = [0, 864], sizes = [6, 288], strides = [1, 1]} : vector<6x1152xf32> to vector<6x288xf32>
    %9 = arith.maximumf %7, %8 : vector<6x288xf32>
    %10 = arith.maximumf %6, %9 : vector<6x288xf32>
    %c0_4 = arith.constant 0 : index
    %c0_5 = arith.constant 0 : index
    %11 = vector.load %arg3[%c0_4, %c0_5] : memref<6x1xf32, #tpu.memory_space<vmem>>, vector<6x1xf32>
    %12 = vector.broadcast %11 : vector<6x1xf32> to vector<6x288xf32>
    %13 = arith.addf %10, %12 : vector<6x288xf32>
    %cst_6 = arith.constant 0.000000e+00 : f32
    %14 = vector.broadcast %cst_6 : f32 to vector<6x288xf32>
    %15 = arith.maximumf %13, %14 : vector<6x288xf32>
    %c0_7 = arith.constant 0 : index
    %c0_8 = arith.constant 0 : index
    %c0_9 = arith.constant 0 : index
    %16 = vector.load %arg4[%c0_7, %c0_8, %c0_9] : memref<1x6x288xf32, #tpu.memory_space<vmem>>, vector<1x6x288xf32>
    %17 = vector.shape_cast %16 : vector<1x6x288xf32> to vector<6x288xf32>
    %18 = vector.shape_cast %15 : vector<6x288xf32> to vector<1x6x288xf32>
    tpu.vector_store %arg4[%c0_7, %c0_8, %c0_9], %18 {strides = array<i32>} : memref<1x6x288xf32, #tpu.memory_space<vmem>>, vector<1x6x288xf32>,
    return
  }
  func.func @transform_0(%arg0: i32) -> (i32, i32, i32) {
    %c0_i32 = arith.constant 0 : i32
    %c0_i32_0 = arith.constant 0 : i32
    %c0_i32_1 = arith.constant 0 : i32
    return %arg0, %c0_i32, %c0_i32_0 : i32, i32, i32
  }
  func.func @transform_1(%arg0: i32) -> (i32, i32) {
    %c0_i32 = arith.constant 0 : i32
    %c0_i32_0 = arith.constant 0 : i32
    %c0_i32_1 = arith.constant 0 : i32
    return %c0_i32, %c0_i32_0 : i32, i32
  }
  func.func @transform_2(%arg0: i32) -> (i32, i32) {
    %c0_i32 = arith.constant 0 : i32
    %c0_i32_0 = arith.constant 0 : i32
    %c0_i32_1 = arith.constant 0 : i32
    return %c0_i32, %c0_i32_0 : i32, i32
  }
  func.func @transform_3(%arg0: i32) -> (i32, i32, i32) {
    %c0_i32 = arith.constant 0 : i32
    %c0_i32_0 = arith.constant 0 : i32
    %c0_i32_1 = arith.constant 0 : i32
    return %arg0, %c0_i32, %c0_i32_0 : i32, i32, i32
  }
}

module attributes {stable_mosaic.version = 11 : i64} {
  func.func @conv2_mlp_kernel(%arg0: i32, %arg1: memref<1x128x150xf32, #tpu.memory_space<vmem>>, %arg2: memref<150x16xf32, #tpu.memory_space<vmem>>, %arg3: memref<1x16xf32, #tpu.memory_space<vmem>>, %arg4: memref<256x120xf32, #tpu.memory_space<vmem>>, %arg5: memref<1x120xf32, #tpu.memory_space<vmem>>, %arg6: memref<120x84xf32, #tpu.memory_space<vmem>>, %arg7: memref<1x84xf32, #tpu.memory_space<vmem>>, %arg8: memref<84x10xf32, #tpu.memory_space<vmem>>, %arg9: memref<1x10xf32, #tpu.memory_space<vmem>>, %arg10: memref<1x2x10xf32, #tpu.memory_space<vmem>>) attributes {dimension_semantics = [#tpu.dimension_semantics<parallel>], iteration_bounds = array<i64: 1>, scalar_prefetch = 0 : i64, scratch_operands = 0 : i64, tpu.core_type = #tpu.core_type<tc>, window_params = [{transform_indices = @transform_0, window_bounds = array<i64: 1, 128, 150>}, {pipeline_mode = #tpu.pipeline_mode<synchronous>, transform_indices = @transform_1, window_bounds = array<i64: 150, 16>}, {pipeline_mode = #tpu.pipeline_mode<synchronous>, transform_indices = @transform_2, window_bounds = array<i64: 1, 16>}, {pipeline_mode = #tpu.pipeline_mode<synchronous>, transform_indices = @transform_3, window_bounds = array<i64: 256, 120>}, {pipeline_mode = #tpu.pipeline_mode<synchronous>, transform_indices = @transform_4, window_bounds = array<i64: 1, 120>}, {pipeline_mode = #tpu.pipeline_mode<synchronous>, transform_indices = @transform_5, window_bounds = array<i64: 120, 84>}, {pipeline_mode = #tpu.pipeline_mode<synchronous>, transform_indices = @transform_6, window_bounds = array<i64: 1, 84>}, {pipeline_mode = #tpu.pipeline_mode<synchronous>, transform_indices = @transform_7, window_bounds = array<i64: 84, 10>}, {pipeline_mode = #tpu.pipeline_mode<synchronous>, transform_indices = @transform_8, window_bounds = array<i64: 1, 10>}, {transform_indices = @transform_9, window_bounds = array<i64: 1, 2, 10>}]} {
    %c0 = arith.constant 0 : index
    %c0_0 = arith.constant 0 : index
    %c0_1 = arith.constant 0 : index
    %0 = vector.load %arg1[%c0, %c0_0, %c0_1] : memref<1x128x150xf32, #tpu.memory_space<vmem>>, vector<1x128x150xf32>
    %1 = vector.shape_cast %0 : vector<1x128x150xf32> to vector<128x150xf32>
    %c0_2 = arith.constant 0 : index
    %c0_3 = arith.constant 0 : index
    %2 = vector.load %arg2[%c0_2, %c0_3] : memref<150x16xf32, #tpu.memory_space<vmem>>, vector<150x16xf32>
    %cst = arith.constant dense<0.000000e+00> : vector<128x16xf32>
    %3 = tpu.matmul %1, %2, %cst {dimension_numbers = #tpu.dot_dimension_numbers<[1], [0], [0], [1], [0, 0, 1, 1], [], []>} : vector<128x150xf32>, vector<150x16xf32>, vector<128x16xf32> -> vector<128x16xf32>
    %4 = vector.extract_strided_slice %3 {offsets = [0, 0], sizes = [32, 16], strides = [1, 1]} : vector<128x16xf32> to vector<32x16xf32>
    %5 = vector.extract_strided_slice %3 {offsets = [32, 0], sizes = [32, 16], strides = [1, 1]} : vector<128x16xf32> to vector<32x16xf32>
    %6 = arith.maximumf %4, %5 : vector<32x16xf32>
    %7 = vector.extract_strided_slice %3 {offsets = [64, 0], sizes = [32, 16], strides = [1, 1]} : vector<128x16xf32> to vector<32x16xf32>
    %8 = vector.extract_strided_slice %3 {offsets = [96, 0], sizes = [32, 16], strides = [1, 1]} : vector<128x16xf32> to vector<32x16xf32>
    %9 = arith.maximumf %7, %8 : vector<32x16xf32>
    %10 = arith.maximumf %6, %9 : vector<32x16xf32>
    %c0_4 = arith.constant 0 : index
    %c0_5 = arith.constant 0 : index
    %11 = vector.load %arg3[%c0_4, %c0_5] : memref<1x16xf32, #tpu.memory_space<vmem>>, vector<1x16xf32>
    %12 = vector.broadcast %11 : vector<1x16xf32> to vector<32x16xf32>
    %13 = arith.addf %10, %12 : vector<32x16xf32>
    %cst_6 = arith.constant 0.000000e+00 : f32
    %14 = vector.broadcast %cst_6 : f32 to vector<32x16xf32>
    %15 = arith.maximumf %13, %14 : vector<32x16xf32>
    %16 = vector.extract_strided_slice %15 {offsets = [0, 0], sizes = [2, 16], strides = [1, 1]} : vector<32x16xf32> to vector<2x16xf32>
    %17 = vector.extract_strided_slice %15 {offsets = [2, 0], sizes = [2, 16], strides = [1, 1]} : vector<32x16xf32> to vector<2x16xf32>
    %18 = vector.extract_strided_slice %15 {offsets = [4, 0], sizes = [2, 16], strides = [1, 1]} : vector<32x16xf32> to vector<2x16xf32>
    %19 = vector.extract_strided_slice %15 {offsets = [6, 0], sizes = [2, 16], strides = [1, 1]} : vector<32x16xf32> to vector<2x16xf32>
    %20 = vector.extract_strided_slice %15 {offsets = [8, 0], sizes = [2, 16], strides = [1, 1]} : vector<32x16xf32> to vector<2x16xf32>
    %21 = vector.extract_strided_slice %15 {offsets = [10, 0], sizes = [2, 16], strides = [1, 1]} : vector<32x16xf32> to vector<2x16xf32>
    %22 = vector.extract_strided_slice %15 {offsets = [12, 0], sizes = [2, 16], strides = [1, 1]} : vector<32x16xf32> to vector<2x16xf32>
    %23 = vector.extract_strided_slice %15 {offsets = [14, 0], sizes = [2, 16], strides = [1, 1]} : vector<32x16xf32> to vector<2x16xf32>
    %24 = vector.extract_strided_slice %15 {offsets = [16, 0], sizes = [2, 16], strides = [1, 1]} : vector<32x16xf32> to vector<2x16xf32>
    %25 = vector.extract_strided_slice %15 {offsets = [18, 0], sizes = [2, 16], strides = [1, 1]} : vector<32x16xf32> to vector<2x16xf32>
    %26 = vector.extract_strided_slice %15 {offsets = [20, 0], sizes = [2, 16], strides = [1, 1]} : vector<32x16xf32> to vector<2x16xf32>
    %27 = vector.extract_strided_slice %15 {offsets = [22, 0], sizes = [2, 16], strides = [1, 1]} : vector<32x16xf32> to vector<2x16xf32>
    %28 = vector.extract_strided_slice %15 {offsets = [24, 0], sizes = [2, 16], strides = [1, 1]} : vector<32x16xf32> to vector<2x16xf32>
    %29 = vector.extract_strided_slice %15 {offsets = [26, 0], sizes = [2, 16], strides = [1, 1]} : vector<32x16xf32> to vector<2x16xf32>
    %30 = vector.extract_strided_slice %15 {offsets = [28, 0], sizes = [2, 16], strides = [1, 1]} : vector<32x16xf32> to vector<2x16xf32>
    %31 = vector.extract_strided_slice %15 {offsets = [30, 0], sizes = [2, 16], strides = [1, 1]} : vector<32x16xf32> to vector<2x16xf32>
    %32 = tpu.concatenate %16, %17, %18, %19, %20, %21, %22, %23, %24, %25, %26, %27, %28, %29, %30, %31 in 1 : vector<2x16xf32>, vector<2x16xf32>, vector<2x16xf32>, vector<2x16xf32>, vector<2x16xf32>, vector<2x16xf32>, vector<2x16xf32>, vector<2x16xf32>, vector<2x16xf32>, vector<2x16xf32>, vector<2x16xf32>, vector<2x16xf32>, vector<2x16xf32>, vector<2x16xf32>, vector<2x16xf32>, vector<2x16xf32> -> vector<2x256xf32>
    %c0_7 = arith.constant 0 : index
    %c0_8 = arith.constant 0 : index
    %33 = vector.load %arg4[%c0_7, %c0_8] : memref<256x120xf32, #tpu.memory_space<vmem>>, vector<256x120xf32>
    %cst_9 = arith.constant dense<0.000000e+00> : vector<2x120xf32>
    %34 = tpu.matmul %32, %33, %cst_9 {dimension_numbers = #tpu.dot_dimension_numbers<[1], [0], [0], [1], [0, 0, 1, 1], [], []>} : vector<2x256xf32>, vector<256x120xf32>, vector<2x120xf32> -> vector<2x120xf32>
    %c0_10 = arith.constant 0 : index
    %c0_11 = arith.constant 0 : index
    %35 = vector.load %arg5[%c0_10, %c0_11] : memref<1x120xf32, #tpu.memory_space<vmem>>, vector<1x120xf32>
    %36 = vector.broadcast %35 : vector<1x120xf32> to vector<2x120xf32>
    %37 = arith.addf %34, %36 : vector<2x120xf32>
    %cst_12 = arith.constant 0.000000e+00 : f32
    %38 = vector.broadcast %cst_12 : f32 to vector<2x120xf32>
    %39 = arith.maximumf %37, %38 : vector<2x120xf32>
    %c0_13 = arith.constant 0 : index
    %c0_14 = arith.constant 0 : index
    %40 = vector.load %arg6[%c0_13, %c0_14] : memref<120x84xf32, #tpu.memory_space<vmem>>, vector<120x84xf32>
    %cst_15 = arith.constant dense<0.000000e+00> : vector<2x84xf32>
    %41 = tpu.matmul %39, %40, %cst_15 {dimension_numbers = #tpu.dot_dimension_numbers<[1], [0], [0], [1], [0, 0, 1, 1], [], []>} : vector<2x120xf32>, vector<120x84xf32>, vector<2x84xf32> -> vector<2x84xf32>
    %c0_16 = arith.constant 0 : index
    %c0_17 = arith.constant 0 : index
    %42 = vector.load %arg7[%c0_16, %c0_17] : memref<1x84xf32, #tpu.memory_space<vmem>>, vector<1x84xf32>
    %43 = vector.broadcast %42 : vector<1x84xf32> to vector<2x84xf32>
    %44 = arith.addf %41, %43 : vector<2x84xf32>
    %cst_18 = arith.constant 0.000000e+00 : f32
    %45 = vector.broadcast %cst_18 : f32 to vector<2x84xf32>
    %46 = arith.maximumf %44, %45 : vector<2x84xf32>
    %c0_19 = arith.constant 0 : index
    %c0_20 = arith.constant 0 : index
    %47 = vector.load %arg8[%c0_19, %c0_20] : memref<84x10xf32, #tpu.memory_space<vmem>>, vector<84x10xf32>
    %cst_21 = arith.constant dense<0.000000e+00> : vector<2x10xf32>
    %48 = tpu.matmul %46, %47, %cst_21 {dimension_numbers = #tpu.dot_dimension_numbers<[1], [0], [0], [1], [0, 0, 1, 1], [], []>} : vector<2x84xf32>, vector<84x10xf32>, vector<2x10xf32> -> vector<2x10xf32>
    %c0_22 = arith.constant 0 : index
    %c0_23 = arith.constant 0 : index
    %49 = vector.load %arg9[%c0_22, %c0_23] : memref<1x10xf32, #tpu.memory_space<vmem>>, vector<1x10xf32>
    %50 = vector.broadcast %49 : vector<1x10xf32> to vector<2x10xf32>
    %51 = arith.addf %48, %50 : vector<2x10xf32>
    %c0_24 = arith.constant 0 : index
    %c0_25 = arith.constant 0 : index
    %c0_26 = arith.constant 0 : index
    %52 = vector.load %arg10[%c0_24, %c0_25, %c0_26] : memref<1x2x10xf32, #tpu.memory_space<vmem>>, vector<1x2x10xf32>
    %53 = vector.shape_cast %52 : vector<1x2x10xf32> to vector<2x10xf32>
    %54 = vector.shape_cast %51 : vector<2x10xf32> to vector<1x2x10xf32>
    tpu.vector_store %arg10[%c0_24, %c0_25, %c0_26], %54 {strides = array<i32>} : memref<1x2x10xf32, #tpu.memory_space<vmem>>, vector<1x2x10xf32>,
    return
  }
  func.func @transform_0(%arg0: i32) -> (i32, i32, i32) {
    %c0_i32 = arith.constant 0 : i32
    %c0_i32_0 = arith.constant 0 : i32
    %c0_i32_1 = arith.constant 0 : i32
    return %arg0, %c0_i32, %c0_i32_0 : i32, i32, i32
  }
  func.func @transform_1(%arg0: i32) -> (i32, i32) {
    %c0_i32 = arith.constant 0 : i32
    %c0_i32_0 = arith.constant 0 : i32
    %c0_i32_1 = arith.constant 0 : i32
    return %c0_i32, %c0_i32_0 : i32, i32
  }
  func.func @transform_2(%arg0: i32) -> (i32, i32) {
    %c0_i32 = arith.constant 0 : i32
    %c0_i32_0 = arith.constant 0 : i32
    %c0_i32_1 = arith.constant 0 : i32
    return %c0_i32, %c0_i32_0 : i32, i32
  }
  func.func @transform_3(%arg0: i32) -> (i32, i32) {
    %c0_i32 = arith.constant 0 : i32
    %c0_i32_0 = arith.constant 0 : i32
    %c0_i32_1 = arith.constant 0 : i32
    return %c0_i32, %c0_i32_0 : i32, i32
  }
  func.func @transform_4(%arg0: i32) -> (i32, i32) {
    %c0_i32 = arith.constant 0 : i32
    %c0_i32_0 = arith.constant 0 : i32
    %c0_i32_1 = arith.constant 0 : i32
    return %c0_i32, %c0_i32_0 : i32, i32
  }
  func.func @transform_5(%arg0: i32) -> (i32, i32) {
    %c0_i32 = arith.constant 0 : i32
    %c0_i32_0 = arith.constant 0 : i32
    %c0_i32_1 = arith.constant 0 : i32
    return %c0_i32, %c0_i32_0 : i32, i32
  }
  func.func @transform_6(%arg0: i32) -> (i32, i32) {
    %c0_i32 = arith.constant 0 : i32
    %c0_i32_0 = arith.constant 0 : i32
    %c0_i32_1 = arith.constant 0 : i32
    return %c0_i32, %c0_i32_0 : i32, i32
  }
  func.func @transform_7(%arg0: i32) -> (i32, i32) {
    %c0_i32 = arith.constant 0 : i32
    %c0_i32_0 = arith.constant 0 : i32
    %c0_i32_1 = arith.constant 0 : i32
    return %c0_i32, %c0_i32_0 : i32, i32
  }
  func.func @transform_8(%arg0: i32) -> (i32, i32) {
    %c0_i32 = arith.constant 0 : i32
    %c0_i32_0 = arith.constant 0 : i32
    %c0_i32_1 = arith.constant 0 : i32
    return %c0_i32, %c0_i32_0 : i32, i32
  }
  func.func @transform_9(%arg0: i32) -> (i32, i32, i32) {
    %c0_i32 = arith.constant 0 : i32
    %c0_i32_0 = arith.constant 0 : i32
    %c0_i32_1 = arith.constant 0 : i32
    return %arg0, %c0_i32, %c0_i32_0 : i32, i32, i32
  }
}

</mosaic_0001>

<llo_original>
// kernel: net_forward.2
$region0: #{net_forward.2}
  #allocation0 [shape = 'u32[]', space=smem, size = 0x4, offset = 0x4, fixed_abs, tag = 'smem constant byte address 0x4 - core index']
  #allocation1 [shape = 'u32[144,128]{1,0:T(1,128)}', space=vmem, size = 0x12000, scoped, tag = 'internal scratch']
  %s0 = inlined_call_operand.hbm [shape: f32[1,25,1152], index: 0, kind: input, shape index: {}]
  %s1 = inlined_call_operand.hbm [shape: f32[6,25], index: 1, kind: input, shape index: {}]
  %s2 = inlined_call_operand.hbm [shape: f32[6,1], index: 2, kind: input, shape index: {}]
  %s3 = inlined_call_operand.hbm [shape: f32[1,6,288], index: 3, kind: output, shape index: {}]
  %s4 = sld [smem:[#allocation0]]
  $region34: #{net_forward.2} parent=0
    _
  %s6 = ssub.s32 1, %s4
  %s7 = scalar_select 0, %s6, %s4
  $region1: #{net_forward.2} parent=0
    #allocation2 [shape = 'u8[147456]{0}', space=vmem, size = 0x24000, scoped, tag = 'input window, operand 0, single buffered']
    #allocation3 [shape = 's32[1]{0}', space=sflag, size = 0x4, scoped, tag = 'scoped memory for net_forward.2']
    #allocation4 [shape = 's32[1]{0}', space=sflag, size = 0x4, scoped, tag = 'scoped memory for net_forward.2']
    #allocation5 [shape = 'u8[4096]{0}', space=vmem, size = 0x1000, scoped, tag = 'input window, operand 1, single buffered']
    #allocation6 [shape = 's32[1]{0}', space=sflag, size = 0x4, scoped, tag = 'scoped memory for net_forward.2']
    #allocation7 [shape = 'u8[4096]{0}', space=vmem, size = 0x1000, scoped, tag = 'input window, operand 2, single buffered']
    #allocation8 [shape = 'u8[12288]{0}', space=vmem, size = 0x3000, scoped, tag = 'output window, operand 0, single buffered']
    %8 = vsyncpa [#allocation3], 0
    %9 = vsyncpa [#allocation6], 0
    %10 = vsyncpa [#allocation4], 0
    // Predicated region
    $region2: #{net_forward.2} parent=1 // pred_check
      _
    $region3: #{net_forward.2} parent=1 // pred_check_branch
      %12 = sbr.rel (0) target = $region5
    $region4: #{net_forward.2} parent=1 // pred_region
      %s14 = ssub.s32 4608, 4608
      %15 = vsyncadd [#allocation3], %s14
      %s16 = sshll.u32 [#allocation2], 4
      %s17 = int_to_ptr.vmem [resolvable:$true] %s16
      %22 = dma.hbm_to_vmem [thread:$0]  %s0, 4608, %s17, [#allocation3], 1152, 1152, 72
    $region5: #{net_forward.2} parent=1 // pred_fallthru
      _
    // Predicated region
    $region6: #{net_forward.2} parent=1 // pred_check
      _
    $region7: #{net_forward.2} parent=1 // pred_check_branch
      %24 = sbr.rel (0) target = $region9
    $region8: #{net_forward.2} parent=1 // pred_region
      %s26 = ssub.s32 128, 128
      %27 = vsyncadd [#allocation6], %s26
      %s29 = sshll.u32 [#allocation5], 4
      %s30 = int_to_ptr.vmem [resolvable:$true] %s29
      %32 = dma.hbm_to_vmem [thread:$0]  %s1, 128, %s30, [#allocation6]
    $region9: #{net_forward.2} parent=1 // pred_fallthru
      _
    // Predicated region
    $region10: #{net_forward.2} parent=1 // pred_check
      _
    $region11: #{net_forward.2} parent=1 // pred_check_branch
      %34 = sbr.rel (0) target = $region13
    $region12: #{net_forward.2} parent=1 // pred_region
      %s36 = ssub.s32 128, 128
      %37 = vsyncadd [#allocation6], %s36
      %s39 = sshll.u32 [#allocation7], 4
      %s40 = int_to_ptr.vmem [resolvable:$true] %s39
      %42 = dma.hbm_to_vmem [thread:$0]  %s2, 128, %s40, [#allocation6]
    $region13: #{net_forward.2} parent=1 // pred_fallthru
      _
    // Predicated region
    $region14: #{net_forward.2} parent=1 // pred_check
      _
    $region15: #{net_forward.2} parent=1 // pred_check_branch
      %44 = sbr.rel (0) target = $region17
    $region16: #{net_forward.2} parent=1 // pred_region
      %45 = dma.done [#allocation3], 4608
    $region17: #{net_forward.2} parent=1 // pred_fallthru
      _
    // Predicated region
    $region18: #{net_forward.2} parent=1 // pred_check
      _
    $region19: #{net_forward.2} parent=1 // pred_check_branch
      %47 = sbr.rel (0) target = $region21
    $region20: #{net_forward.2} parent=1 // pred_region
      %48 = dma.done [#allocation6], 128
    $region21: #{net_forward.2} parent=1 // pred_fallthru
      _
    // Predicated region
    $region22: #{net_forward.2} parent=1 // pred_check
      _
    $region23: #{net_forward.2} parent=1 // pred_check_branch
      %50 = sbr.rel (0) target = $region25
    $region24: #{net_forward.2} parent=1 // pred_region
      %51 = dma.done [#allocation6], 128
    $region25: #{net_forward.2} parent=1 // pred_fallthru
      _
    %v52 = vld [vmem:[#allocation5] sm:$0x3f]
    %v53 = vld [vmem:[#allocation2] sm:$0xff]
    %v54 = vld [vmem:[#allocation2 + $0x8] sm:$0xff]
    %v55 = vld [vmem:[#allocation2 + $0x10] sm:$0xff]
    %v56 = vld [vmem:[#allocation2 + $0x18] sm:$0xff]
    %v57 = vld [vmem:[#allocation2 + $0x20] sm:$0xff]
    %v58 = vld [vmem:[#allocation2 + $0x28] sm:$0xff]
    %v59 = vld [vmem:[#allocation2 + $0x30] sm:$0xff]
    %v60 = vld [vmem:[#allocation2 + $0x38] sm:$0xff]
    %v61 = vld [vmem:[#allocation2 + $0x40] sm:$0xff]
    %v62 = vld [vmem:[#allocation2 + $0x48] sm:$0xff]
    %v63 = vld [vmem:[#allocation2 + $0x50] sm:$0xff]
    %v64 = vld [vmem:[#allocation2 + $0x58] sm:$0xff]
    %v65 = vld [vmem:[#allocation2 + $0x60] sm:$0xff]
    %v66 = vld [vmem:[#allocation2 + $0x68] sm:$0xff]
    %v67 = vld [vmem:[#allocation2 + $0x70] sm:$0xff]
    %v68 = vld [vmem:[#allocation2 + $0x78] sm:$0xff]
    %v69 = vld [vmem:[#allocation2 + $0x80] sm:$0xff]
    %v70 = vld [vmem:[#allocation2 + $0x88] sm:$0xff]
    %v71 = vld [vmem:[#allocation2 + $0x90] sm:$0xff]
    %v72 = vld [vmem:[#allocation2 + $0x98] sm:$0xff]
    %v73 = vld [vmem:[#allocation2 + $0xa0] sm:$0xff]
    %v74 = vld [vmem:[#allocation2 + $0xa8] sm:$0xff]
    %v75 = vld [vmem:[#allocation2 + $0xb0] sm:$0xff]
    %v76 = vld [vmem:[#allocation2 + $0xb8] sm:$0xff]
    %v77 = vld [vmem:[#allocation2 + $0xc0] sm:$0xff]
    %v78 = vld [vmem:[#allocation2 + $0xc8] sm:$0xff]
    %v79 = vld [vmem:[#allocation2 + $0xd0] sm:$0xff]
    %v80 = vld [vmem:[#allocation2 + $0xd8] sm:$0x1]
    %v81 = vld [vmem:[#allocation2 + $0xe0] sm:$0x1]
    %v82 = vld [vmem:[#allocation2 + $0xe8] sm:$0x1]
    %v83 = vld [vmem:[#allocation2 + $0xf0] sm:$0x1]
    %v84 = vld [vmem:[#allocation2 + $0xf8] sm:$0x1]
    %v85 = vld [vmem:[#allocation2 + $0x100] sm:$0x1]
    %v86 = vld [vmem:[#allocation2 + $0x108] sm:$0x1]
    %v87 = vld [vmem:[#allocation2 + $0x110] sm:$0x1]
    %v88 = vld [vmem:[#allocation2 + $0x118] sm:$0x1]
    %vm89 = vcmask 203776
    %v91 = vsel %vm89, %v52, 0
    %vm93 = vcmask 1040384
    %v95 = vsel %vm93, %v80, 0
    %v98 = vsel %vm93, %v81, 0
    %v101 = vsel %vm93, %v82, 0
    %v104 = vsel %vm93, %v83, 0
    %v107 = vsel %vm93, %v84, 0
    %v110 = vsel %vm93, %v85, 0
    %v113 = vsel %vm93, %v86, 0
    %v116 = vsel %vm93, %v87, 0
    %v119 = vsel %vm93, %v88, 0
    %121 = vmatprep.subr.mxu0 %v54
    %122 = vmatpush1.msra.mxu0 %v53
    %123 = vmatprep.subr.mxu0 %v63
    %124 = vmatpush1.msra.mxu0 %v62
    %125 = vmatprep.subr.mxu0 %v72
    %126 = vmatpush1.msra.mxu0 %v71
    %127 = vmatprep.subr.mxu0 %v98
    %128 = vmatpush1.msra.mxu0 %v95
    %129 = vmatprep.subr.mxu0 0.0
    %130 = vmatpush1.msra.mxu0 0.0
    %131 = vmatprep.subr.mxu0 0.0
    %132 = vmatpush1.msra.mxu0 0.0
    %133 = vmatprep.subr.mxu0 0.0
    %134 = vmatpush1.msra.mxu0 0.0
    %135 = vmatprep.subr.mxu0 0.0
    %136 = vmatpush1.msra.mxu0 0.0
    %137 = vmatprep.subr.mxu0 0.0
    %138 = vmatpush1.msra.mxu0 0.0
    %139 = vmatprep.subr.mxu0 0.0
    %140 = vmatpush1.msra.mxu0 0.0
    %141 = vmatprep.subr.mxu0 0.0
    %142 = vmatpush1.msra.mxu0 0.0
    %143 = vmatprep.subr.mxu0 0.0
    %144 = vmatpush1.msra.mxu0 0.0
    %145 = vmatprep.subr.mxu0 0.0
    %146 = vmatpush1.msra.mxu0 0.0
    %147 = vmatprep.subr.mxu0 0.0
    %148 = vmatpush1.msra.mxu0 0.0
    %149 = vmatprep.subr.mxu0 0.0
    %150 = vmatpush1.msra.mxu0 0.0
    %151 = vmatprep.subr.mxu0 0.0
    %152 = vmatpush1.msra.mxu0 0.0
    %153 = vmatprep.subr.mxu0 0.0
    %154 = vmatpush1.msra.mxu0 0.0
    %155 = vmatprep.subr.mxu0 0.0
    %156 = vmatpush1.msra.mxu0 0.0
    %157 = vmatprep.subr.mxu0 0.0
    %158 = vmatpush1.msra.mxu0 0.0
    %159 = vmatprep.subr.mxu0 0.0
    %160 = vmatpush1.msra.mxu0 0.0
    %161 = vmatprep.subr.mxu0 0.0
    %162 = vmatpush1.msra.mxu0 0.0
    %163 = vmatprep.subr.mxu0 0.0
    %164 = vmatpush1.msra.mxu0 0.0
    %165 = vmatprep.subr.mxu0 0.0
    %166 = vmatpush1.msra.mxu0 0.0
    %167 = vmatprep.subr.mxu0 0.0
    %168 = vmatpush1.msra.mxu0 0.0
    %169 = vmatprep.subr.mxu0 0.0
    %170 = vmatpush1.msra.mxu0 0.0
    %171 = vmatprep.subr.mxu0 0.0
    %172 = vmatpush1.msra.mxu0 0.0
    %173 = vmatprep.subr.mxu0 0.0
    %174 = vmatpush1.msra.mxu0 0.0
    %175 = vmatprep.subr.mxu0 0.0
    %176 = vmatpush1.msra.mxu0 0.0
    %177 = vmatprep.subr.mxu0 0.0
    %178 = vmatpush1.msra.mxu0 0.0
    %179 = vmatprep.subr.mxu0 0.0
    %180 = vmatpush1.msra.mxu0 0.0
    %181 = vmatprep.subr.mxu0 0.0
    %182 = vmatpush1.msra.mxu0 0.0
    %183 = vmatprep.subr.mxu0 0.0
    %184 = vmatpush1.msra.mxu0 0.0
    %185 = vmatprep.mubr.f32.mxu0 0.0
    %186 = vmatmul.mubr.f32.gmra.mrb[0].mxu0 %v91
    %v187 = vpop.f32.mrb[0].mxu0
    %v188 = vadd.f32 0.0, %v187
    %v189 = vpop.f32.mrb[0].mxu0
    %v190 = vadd.f32 0.0, %v189
    %191 = vdwg.mxu0
    %192 = vmatprep.subr.mxu0 %v56
    %193 = vmatpush1.msra.mxu0 %v55
    %194 = vmatprep.subr.mxu0 %v65
    %195 = vmatpush1.msra.mxu0 %v64
    %196 = vmatprep.subr.mxu0 %v74
    %197 = vmatpush1.msra.mxu0 %v73
    %198 = vmatprep.subr.mxu0 %v104
    %199 = vmatpush1.msra.mxu0 %v101
    %200 = vmatprep.subr.mxu0 0.0
    %201 = vmatpush1.msra.mxu0 0.0
    %202 = vmatprep.subr.mxu0 0.0
    %203 = vmatpush1.msra.mxu0 0.0
    %204 = vmatprep.subr.mxu0 0.0
    %205 = vmatpush1.msra.mxu0 0.0
    %206 = vmatprep.subr.mxu0 0.0
    %207 = vmatpush1.msra.mxu0 0.0
    %208 = vmatprep.subr.mxu0 0.0
    %209 = vmatpush1.msra.mxu0 0.0
    %210 = vmatprep.subr.mxu0 0.0
    %211 = vmatpush1.msra.mxu0 0.0
    %212 = vmatprep.subr.mxu0 0.0
    %213 = vmatpush1.msra.mxu0 0.0
    %214 = vmatprep.subr.mxu0 0.0
    %215 = vmatpush1.msra.mxu0 0.0
    %216 = vmatprep.subr.mxu0 0.0
    %217 = vmatpush1.msra.mxu0 0.0
    %218 = vmatprep.subr.mxu0 0.0
    %219 = vmatpush1.msra.mxu0 0.0
    %220 = vmatprep.subr.mxu0 0.0
    %221 = vmatpush1.msra.mxu0 0.0
    %222 = vmatprep.subr.mxu0 0.0
    %223 = vmatpush1.msra.mxu0 0.0
    %224 = vmatprep.subr.mxu0 0.0
    %225 = vmatpush1.msra.mxu0 0.0
    %226 = vmatprep.subr.mxu0 0.0
    %227 = vmatpush1.msra.mxu0 0.0
    %228 = vmatprep.subr.mxu0 0.0
    %229 = vmatpush1.msra.mxu0 0.0
    %230 = vmatprep.subr.mxu0 0.0
    %231 = vmatpush1.msra.mxu0 0.0
    %232 = vmatprep.subr.mxu0 0.0
    %233 = vmatpush1.msra.mxu0 0.0
    %234 = vmatprep.subr.mxu0 0.0
    %235 = vmatpush1.msra.mxu0 0.0
    %236 = vmatprep.subr.mxu0 0.0
    %237 = vmatpush1.msra.mxu0 0.0
    %238 = vmatprep.subr.mxu0 0.0
    %239 = vmatpush1.msra.mxu0 0.0
    %240 = vmatprep.subr.mxu0 0.0
    %241 = vmatpush1.msra.mxu0 0.0
    %242 = vmatprep.subr.mxu0 0.0
    %243 = vmatpush1.msra.mxu0 0.0
    %244 = vmatprep.subr.mxu0 0.0
    %245 = vmatpush1.msra.mxu0 0.0
    %246 = vmatprep.subr.mxu0 0.0
    %247 = vmatpush1.msra.mxu0 0.0
    %248 = vmatprep.subr.mxu0 0.0
    %249 = vmatpush1.msra.mxu0 0.0
    %250 = vmatprep.subr.mxu0 0.0
    %251 = vmatpush1.msra.mxu0 0.0
    %252 = vmatprep.subr.mxu0 0.0
    %253 = vmatpush1.msra.mxu0 0.0
    %254 = vmatprep.subr.mxu0 0.0
    %255 = vmatpush1.msra.mxu0 0.0
    %256 = vmatprep.mubr.f32.mxu0 0.0
    %257 = vmatmul.mubr.f32.gmra.mrb[0].mxu0 %v91
    %v258 = vpop.f32.mrb[0].mxu0
    %v259 = vadd.f32 0.0, %v258
    %v260 = vpop.f32.mrb[0].mxu0
    %v261 = vadd.f32 0.0, %v260
    %262 = vdwg.mxu0
    %263 = vmatprep.subr.mxu0 %v58
    %264 = vmatpush1.msra.mxu0 %v57
    %265 = vmatprep.subr.mxu0 %v67
    %266 = vmatpush1.msra.mxu0 %v66
    %267 = vmatprep.subr.mxu0 %v76
    %268 = vmatpush1.msra.mxu0 %v75
    %269 = vmatprep.subr.mxu0 %v110
    %270 = vmatpush1.msra.mxu0 %v107
    %271 = vmatprep.subr.mxu0 0.0
    %272 = vmatpush1.msra.mxu0 0.0
    %273 = vmatprep.subr.mxu0 0.0
    %274 = vmatpush1.msra.mxu0 0.0
    %275 = vmatprep.subr.mxu0 0.0
    %276 = vmatpush1.msra.mxu0 0.0
    %277 = vmatprep.subr.mxu0 0.0
    %278 = vmatpush1.msra.mxu0 0.0
    %279 = vmatprep.subr.mxu0 0.0
    %280 = vmatpush1.msra.mxu0 0.0
    %281 = vmatprep.subr.mxu0 0.0
    %282 = vmatpush1.msra.mxu0 0.0
    %283 = vmatprep.subr.mxu0 0.0
    %284 = vmatpush1.msra.mxu0 0.0
    %285 = vmatprep.subr.mxu0 0.0
    %286 = vmatpush1.msra.mxu0 0.0
    %287 = vmatprep.subr.mxu0 0.0
    %288 = vmatpush1.msra.mxu0 0.0
    %289 = vmatprep.subr.mxu0 0.0
    %290 = vmatpush1.msra.mxu0 0.0
    %291 = vmatprep.subr.mxu0 0.0
    %292 = vmatpush1.msra.mxu0 0.0
    %293 = vmatprep.subr.mxu0 0.0
    %294 = vmatpush1.msra.mxu0 0.0
    %295 = vmatprep.subr.mxu0 0.0
    %296 = vmatpush1.msra.mxu0 0.0
    %297 = vmatprep.subr.mxu0 0.0
    %298 = vmatpush1.msra.mxu0 0.0
    %299 = vmatprep.subr.mxu0 0.0
    %300 = vmatpush1.msra.mxu0 0.0
    %301 = vmatprep.subr.mxu0 0.0
    %302 = vmatpush1.msra.mxu0 0.0
    %303 = vmatprep.subr.mxu0 0.0
    %304 = vmatpush1.msra.mxu0 0.0
    %305 = vmatprep.subr.mxu0 0.0
    %306 = vmatpush1.msra.mxu0 0.0
    %307 = vmatprep.subr.mxu0 0.0
    %308 = vmatpush1.msra.mxu0 0.0
    %309 = vmatprep.subr.mxu0 0.0
    %310 = vmatpush1.msra.mxu0 0.0
    %311 = vmatprep.subr.mxu0 0.0
    %312 = vmatpush1.msra.mxu0 0.0
    %313 = vmatprep.subr.mxu0 0.0
    %314 = vmatpush1.msra.mxu0 0.0
    %315 = vmatprep.subr.mxu0 0.0
    %316 = vmatpush1.msra.mxu0 0.0
    %317 = vmatprep.subr.mxu0 0.0
    %318 = vmatpush1.msra.mxu0 0.0
    %319 = vmatprep.subr.mxu0 0.0
    %320 = vmatpush1.msra.mxu0 0.0
    %321 = vmatprep.subr.mxu0 0.0
    %322 = vmatpush1.msra.mxu0 0.0
    %323 = vmatprep.subr.mxu0 0.0
    %324 = vmatpush1.msra.mxu0 0.0
    %325 = vmatprep.subr.mxu0 0.0
    %326 = vmatpush1.msra.mxu0 0.0
    %327 = vmatprep.mubr.f32.mxu0 0.0
    %328 = vmatmul.mubr.f32.gmra.mrb[0].mxu0 %v91
    %v329 = vpop.f32.mrb[0].mxu0
    %v330 = vadd.f32 0.0, %v329
    %v331 = vpop.f32.mrb[0].mxu0
    %v332 = vadd.f32 0.0, %v331
    %333 = vdwg.mxu0
    %334 = vmatprep.subr.mxu0 %v60
    %335 = vmatpush1.msra.mxu0 %v59
    %336 = vmatprep.subr.mxu0 %v69
    %337 = vmatpush1.msra.mxu0 %v68
    %338 = vmatprep.subr.mxu0 %v78
    %339 = vmatpush1.msra.mxu0 %v77
    %340 = vmatprep.subr.mxu0 %v116
    %341 = vmatpush1.msra.mxu0 %v113
    %342 = vmatprep.subr.mxu0 0.0
    %343 = vmatpush1.msra.mxu0 0.0
    %344 = vmatprep.subr.mxu0 0.0
    %345 = vmatpush1.msra.mxu0 0.0
    %346 = vmatprep.subr.mxu0 0.0
    %347 = vmatpush1.msra.mxu0 0.0
    %348 = vmatprep.subr.mxu0 0.0
    %349 = vmatpush1.msra.mxu0 0.0
    %350 = vmatprep.subr.mxu0 0.0
    %351 = vmatpush1.msra.mxu0 0.0
    %352 = vmatprep.subr.mxu0 0.0
    %353 = vmatpush1.msra.mxu0 0.0
    %354 = vmatprep.subr.mxu0 0.0
    %355 = vmatpush1.msra.mxu0 0.0
    %356 = vmatprep.subr.mxu0 0.0
    %357 = vmatpush1.msra.mxu0 0.0
    %358 = vmatprep.subr.mxu0 0.0
    %359 = vmatpush1.msra.mxu0 0.0
    %360 = vmatprep.subr.mxu0 0.0
    %361 = vmatpush1.msra.mxu0 0.0
    %362 = vmatprep.subr.mxu0 0.0
    %363 = vmatpush1.msra.mxu0 0.0
    %364 = vmatprep.subr.mxu0 0.0
    %365 = vmatpush1.msra.mxu0 0.0
    %366 = vmatprep.subr.mxu0 0.0
    %367 = vmatpush1.msra.mxu0 0.0
    %368 = vmatprep.subr.mxu0 0.0
    %369 = vmatpush1.msra.mxu0 0.0
    %370 = vmatprep.subr.mxu0 0.0
    %371 = vmatpush1.msra.mxu0 0.0
    %372 = vmatprep.subr.mxu0 0.0
    %373 = vmatpush1.msra.mxu0 0.0
    %374 = vmatprep.subr.mxu0 0.0
    %375 = vmatpush1.msra.mxu0 0.0
    %376 = vmatprep.subr.mxu0 0.0
    %377 = vmatpush1.msra.mxu0 0.0
    %378 = vmatprep.subr.mxu0 0.0
    %379 = vmatpush1.msra.mxu0 0.0
    %380 = vmatprep.subr.mxu0 0.0
    %381 = vmatpush1.msra.mxu0 0.0
    %382 = vmatprep.subr.mxu0 0.0
    %383 = vmatpush1.msra.mxu0 0.0
    %384 = vmatprep.subr.mxu0 0.0
    %385 = vmatpush1.msra.mxu0 0.0
    %386 = vmatprep.subr.mxu0 0.0
    %387 = vmatpush1.msra.mxu0 0.0
    %388 = vmatprep.subr.mxu0 0.0
    %389 = vmatpush1.msra.mxu0 0.0
    %390 = vmatprep.subr.mxu0 0.0
    %391 = vmatpush1.msra.mxu0 0.0
    %392 = vmatprep.subr.mxu0 0.0
    %393 = vmatpush1.msra.mxu0 0.0
    %394 = vmatprep.subr.mxu0 0.0
    %395 = vmatpush1.msra.mxu0 0.0
    %396 = vmatprep.subr.mxu0 0.0
    %397 = vmatpush1.msra.mxu0 0.0
    %398 = vmatprep.mubr.f32.mxu0 0.0
    %399 = vmatmul.mubr.f32.gmra.mrb[0].mxu0 %v91
    %v400 = vpop.f32.mrb[0].mxu0
    %v401 = vadd.f32 0.0, %v400
    %v402 = vpop.f32.mrb[0].mxu0
    %v403 = vadd.f32 0.0, %v402
    %404 = vdwg.mxu0
    %405 = vmatprep.subr.mxu0 0.0
    %406 = vmatpush1.msra.mxu0 %v61
    %407 = vmatprep.subr.mxu0 0.0
    %408 = vmatpush1.msra.mxu0 %v70
    %409 = vmatprep.subr.mxu0 0.0
    %410 = vmatpush1.msra.mxu0 %v79
    %411 = vmatprep.subr.mxu0 0.0
    %412 = vmatpush1.msra.mxu0 %v119
    %413 = vmatprep.subr.mxu0 0.0
    %414 = vmatpush1.msra.mxu0 0.0
    %415 = vmatprep.subr.mxu0 0.0
    %416 = vmatpush1.msra.mxu0 0.0
    %417 = vmatprep.subr.mxu0 0.0
    %418 = vmatpush1.msra.mxu0 0.0
    %419 = vmatprep.subr.mxu0 0.0
    %420 = vmatpush1.msra.mxu0 0.0
    %421 = vmatprep.subr.mxu0 0.0
    %422 = vmatpush1.msra.mxu0 0.0
    %423 = vmatprep.subr.mxu0 0.0
    %424 = vmatpush1.msra.mxu0 0.0
    %425 = vmatprep.subr.mxu0 0.0
    %426 = vmatpush1.msra.mxu0 0.0
    %427 = vmatprep.subr.mxu0 0.0
    %428 = vmatpush1.msra.mxu0 0.0
    %429 = vmatprep.subr.mxu0 0.0
    %430 = vmatpush1.msra.mxu0 0.0
    %431 = vmatprep.subr.mxu0 0.0
    %432 = vmatpush1.msra.mxu0 0.0
    %433 = vmatprep.subr.mxu0 0.0
    %434 = vmatpush1.msra.mxu0 0.0
    %435 = vmatprep.subr.mxu0 0.0
    %436 = vmatpush1.msra.mxu0 0.0
    %437 = vmatprep.subr.mxu0 0.0
    %438 = vmatpush1.msra.mxu0 0.0
    %439 = vmatprep.subr.mxu0 0.0
    %440 = vmatpush1.msra.mxu0 0.0
    %441 = vmatprep.subr.mxu0 0.0
    %442 = vmatpush1.msra.mxu0 0.0
    %443 = vmatprep.subr.mxu0 0.0
    %444 = vmatpush1.msra.mxu0 0.0
    %445 = vmatprep.subr.mxu0 0.0
    %446 = vmatpush1.msra.mxu0 0.0
    %447 = vmatprep.subr.mxu0 0.0
    %448 = vmatpush1.msra.mxu0 0.0
    %449 = vmatprep.subr.mxu0 0.0
    %450 = vmatpush1.msra.mxu0 0.0
    %451 = vmatprep.subr.mxu0 0.0
    %452 = vmatpush1.msra.mxu0 0.0
    %453 = vmatprep.subr.mxu0 0.0
    %454 = vmatpush1.msra.mxu0 0.0
    %455 = vmatprep.subr.mxu0 0.0
    %456 = vmatpush1.msra.mxu0 0.0
    %457 = vmatprep.subr.mxu0 0.0
    %458 = vmatpush1.msra.mxu0 0.0
    %459 = vmatprep.subr.mxu0 0.0
    %460 = vmatpush1.msra.mxu0 0.0
    %461 = vmatprep.subr.mxu0 0.0
    %462 = vmatpush1.msra.mxu0 0.0
    %463 = vmatprep.subr.mxu0 0.0
    %464 = vmatpush1.msra.mxu0 0.0
    %465 = vmatprep.subr.mxu0 0.0
    %466 = vmatpush1.msra.mxu0 0.0
    %467 = vmatprep.subr.mxu0 0.0
    %468 = vmatpush1.msra.mxu0 0.0
    %469 = vmatprep.mubr.f32.mxu0 0.0
    %470 = vmatmul.mubr.f32.gmra.mrb[0].mxu0 %v91
    %v471 = vpop.f32.mrb[0].mxu0
    %v472 = vadd.f32 0.0, %v471
    %v473 = vpop.f32.mrb[0].mxu0
    %474 = vdwg.mxu0
    %478 = vrot.lane.b32.xlu0 %v259, 96
    %v479 = vpop.permute.xlu0 %478
    %480 = vrot.lane.b32.xlu0 %v261, 96
    %v481 = vpop.permute.xlu0 %480
    %482 = vrot.lane.b32.xlu0 %v330, 96
    %v483 = vpop.permute.xlu0 %482
    %vm484 = vcmask 785408
    %v485 = vsel %vm484, %v479, %v481
    %v486 = vsel %vm484, %v481, %v483
    %v490 = vmax.f32 %v188, %v485
    %v491 = vmax.f32 %v190, %v486
    %v492 = vmax.f32 %v259, %v483
    %496 = vrot.lane.b32.xlu0 %v401, 96
    %v497 = vpop.permute.xlu0 %496
    %498 = vrot.lane.b32.xlu0 %v403, 96
    %v499 = vpop.permute.xlu0 %498
    %500 = vrot.lane.b32.xlu0 %v472, 96
    %v501 = vpop.permute.xlu0 %500
    %v502 = vsel %vm484, %v497, %v499
    %v503 = vsel %vm484, %v499, %v501
    %v507 = vmax.f32 %v330, %v502
    %v508 = vmax.f32 %v332, %v503
    %v509 = vmax.f32 %v401, %v501
    %513 = vrot.lane.b32.xlu0 %v507, 64
    %v514 = vpop.permute.xlu0 %513
    %515 = vrot.lane.b32.xlu0 %v508, 64
    %v516 = vpop.permute.xlu0 %515
    %517 = vrot.lane.b32.xlu0 %v509, 64
    %v518 = vpop.permute.xlu0 %517
    %vm519 = vcmask 523264
    %v520 = vsel %vm519, %v514, %v516
    %v521 = vsel %vm519, %v516, %v518
    %v525 = vmax.f32 %v490, %v520
    %v526 = vmax.f32 %v491, %v521
    %v527 = vmax.f32 %v492, %v518
    %v528 = vld [vmem:[#allocation7] sm:$0x3f]
    %530 = vset.pattern.permute.xlu0 0
    %531 = vperm.xlu0 %530, %v528
    %v532 = vpop.permute.xlu0 %531
    %v534 = vadd.f32 %v525, %v532
    %v535 = vadd.f32 %v526, %v532
    %v536 = vadd.f32 %v527, %v532
    %v537 = vmax.f32 %v534, 0.0
    %v538 = vmax.f32 %v535, 0.0
    %v539 = vmax.f32 %v536, 0.0
    %540 = vst [vmem:[#allocation8] sm:$0x3f] %v537
    %541 = vst [vmem:[#allocation8 + $0x8] sm:$0x3f] %v538
    %vm542 = vcmask 259072
    %543 = vst.msk [vmem:[#allocation8 + $0x10] sm:$0x3f] %vm542, %v539
    // Predicated region
    $region26: #{net_forward.2} parent=1 // pred_check
      _
    $region27: #{net_forward.2} parent=1 // pred_check_branch
      %545 = sbr.rel (0) target = $region29
    $region28: #{net_forward.2} parent=1 // pred_region
      %s547 = ssub.s32 384, 384
      %548 = vsyncadd [#allocation4], %s547
      %s550 = sshll.u32 [#allocation8], 4
      %s551 = int_to_ptr.vmem [resolvable:$true] %s550
      %553 = dma.vmem_to_hbm [thread:$0]  %s551, 384, %s3, [#allocation4]
    $region29: #{net_forward.2} parent=1 // pred_fallthru
      _
    // Predicated region
    $region30: #{net_forward.2} parent=1 // pred_check
      _
    $region31: #{net_forward.2} parent=1 // pred_check_branch
      %555 = sbr.rel (0) target = $region33
    $region32: #{net_forward.2} parent=1 // pred_region
      %556 = dma.done [#allocation4], 384
    $region33: #{net_forward.2} parent=1 // pred_fallthru
      _
    %557 = vsyncpa [#allocation3], 1
    %558 = vsyncpa [#allocation6], 1
    %559 = vsyncpa [#allocation4], 1

// kernel: net_forward.3
$region0: #{net_forward.3}
  #allocation0 [shape = 'u32[]', space=smem, size = 0x4, offset = 0x4, fixed_abs, tag = 'smem constant byte address 0x4 - core index']
  #allocation1 [shape = 'u32[144,128]{1,0:T(1,128)}', space=vmem, size = 0x12000, scoped, tag = 'internal scratch']
  %s0 = inlined_call_operand.hbm [shape: f32[1,128,150], index: 0, kind: input, shape index: {}]
  %s1 = inlined_call_operand.hbm [shape: f32[150,16], index: 1, kind: input, shape index: {}]
  %s2 = inlined_call_operand.hbm [shape: f32[1,16], index: 2, kind: input, shape index: {}]
  %s3 = inlined_call_operand.hbm [shape: f32[256,120], index: 3, kind: input, shape index: {}]
  %s4 = inlined_call_operand.hbm [shape: f32[1,120], index: 4, kind: input, shape index: {}]
  %s5 = inlined_call_operand.hbm [shape: f32[120,84], index: 5, kind: input, shape index: {}]
  %s6 = inlined_call_operand.hbm [shape: f32[1,84], index: 6, kind: input, shape index: {}]
  %s7 = inlined_call_operand.hbm [shape: f32[84,10], index: 7, kind: input, shape index: {}]
  %s8 = inlined_call_operand.hbm [shape: f32[1,10], index: 8, kind: input, shape index: {}]
  %s9 = inlined_call_operand.hbm [shape: f32[1,2,10], index: 9, kind: output, shape index: {}]
  %s10 = sld [smem:[#allocation0]]
  $region82: #{net_forward.3} parent=0
    _
  %s12 = ssub.s32 1, %s10
  %s13 = scalar_select 0, %s12, %s10
  $region1: #{net_forward.3} parent=0
    #allocation2 [shape = 'u8[131072]{0}', space=vmem, size = 0x20000, scoped, tag = 'input window, operand 0, single buffered']
    #allocation3 [shape = 's32[1]{0}', space=sflag, size = 0x4, scoped, tag = 'scoped memory for net_forward.3']
    #allocation4 [shape = 's32[1]{0}', space=sflag, size = 0x4, scoped, tag = 'scoped memory for net_forward.3']
    #allocation5 [shape = 'u8[77824]{0}', space=vmem, size = 0x13000, scoped, tag = 'input window, operand 1, single buffered']
    #allocation6 [shape = 's32[1]{0}', space=sflag, size = 0x4, scoped, tag = 'scoped memory for net_forward.3']
    #allocation7 [shape = 'u8[512]{0}', space=vmem, size = 0x400, scoped, tag = 'input window, operand 2, single buffered']
    #allocation8 [shape = 'u8[131072]{0}', space=vmem, size = 0x20000, scoped, tag = 'input window, operand 3, single buffered']
    #allocation9 [shape = 's32[1]{0}', space=sflag, size = 0x4, scoped, tag = 'scoped memory for net_forward.3']
    #allocation10 [shape = 'u8[512]{0}', space=vmem, size = 0x400, scoped, tag = 'input window, operand 4, single buffered']
    #allocation11 [shape = 'u8[61440]{0}', space=vmem, size = 0xf000, scoped, tag = 'input window, operand 5, single buffered']
    #allocation12 [shape = 's32[1]{0}', space=sflag, size = 0x4, scoped, tag = 'scoped memory for net_forward.3']
    #allocation13 [shape = 'u8[512]{0}', space=vmem, size = 0x400, scoped, tag = 'input window, operand 6, single buffered']
    #allocation14 [shape = 'u8[45056]{0}', space=vmem, size = 0xb000, scoped, tag = 'input window, operand 7, single buffered']
    #allocation15 [shape = 's32[1]{0}', space=sflag, size = 0x4, scoped, tag = 'scoped memory for net_forward.3']
    #allocation16 [shape = 'u8[512]{0}', space=vmem, size = 0x400, scoped, tag = 'input window, operand 8, single buffered']
    #allocation17 [shape = 'u8[1024]{0}', space=vmem, size = 0x400, scoped, tag = 'output window, operand 0, single buffered']
    %14 = vsyncpa [#allocation3], 0
    %15 = vsyncpa [#allocation6], 0
    %16 = vsyncpa [#allocation9], 0
    %17 = vsyncpa [#allocation12], 0
    %18 = vsyncpa [#allocation15], 0
    %19 = vsyncpa [#allocation4], 0
    // Predicated region
    $region2: #{net_forward.3} parent=1 // pred_check
      _
    $region3: #{net_forward.3} parent=1 // pred_check_branch
      %21 = sbr.rel (0) target = $region5
    $region4: #{net_forward.3} parent=1 // pred_region
      %s23 = ssub.s32 4096, 4096
      %24 = vsyncadd [#allocation3], %s23
      %s25 = sshll.u32 [#allocation2], 4
      %s26 = int_to_ptr.vmem [resolvable:$true] %s25
      %31 = dma.hbm_to_vmem [thread:$0]  %s0, 4096, %s26, [#allocation3], 256, 256, 16
    $region5: #{net_forward.3} parent=1 // pred_fallthru
      _
    // Predicated region
    $region6: #{net_forward.3} parent=1 // pred_check
      _
    $region7: #{net_forward.3} parent=1 // pred_check_branch
      %33 = sbr.rel (0) target = $region9
    $region8: #{net_forward.3} parent=1 // pred_region
      %s35 = ssub.s32 2432, 2432
      %36 = vsyncadd [#allocation6], %s35
      %s37 = sshll.u32 [#allocation5], 4
      %s38 = int_to_ptr.vmem [resolvable:$true] %s37
      %43 = dma.hbm_to_vmem [thread:$0]  %s1, 2432, %s38, [#allocation6], 128, 128, 8
    $region9: #{net_forward.3} parent=1 // pred_fallthru
      _
    // Predicated region
    $region10: #{net_forward.3} parent=1 // pred_check
      _
    $region11: #{net_forward.3} parent=1 // pred_check_branch
      %45 = sbr.rel (0) target = $region13
    $region12: #{net_forward.3} parent=1 // pred_region
      %s47 = ssub.s32 16, 16
      %48 = vsyncadd [#allocation6], %s47
      %s50 = sshll.u32 [#allocation7], 4
      %s51 = int_to_ptr.vmem [resolvable:$true] %s50
      %53 = dma.hbm_to_vmem [thread:$0]  %s2, 16, %s51, [#allocation6]
    $region13: #{net_forward.3} parent=1 // pred_fallthru
      _
    // Predicated region
    $region14: #{net_forward.3} parent=1 // pred_check
      _
    $region15: #{net_forward.3} parent=1 // pred_check_branch
      %55 = sbr.rel (0) target = $region17
    $region16: #{net_forward.3} parent=1 // pred_region
      %s57 = ssub.s32 4096, 4096
      %58 = vsyncadd [#allocation9], %s57
      %s59 = sshll.u32 [#allocation8], 4
      %s60 = int_to_ptr.vmem [resolvable:$true] %s59
      %65 = dma.hbm_to_vmem [thread:$0]  %s3, 4096, %s60, [#allocation9], 128, 128, 8
    $region17: #{net_forward.3} parent=1 // pred_fallthru
      _
    // Predicated region
    $region18: #{net_forward.3} parent=1 // pred_check
      _
    $region19: #{net_forward.3} parent=1 // pred_check_branch
      %67 = sbr.rel (0) target = $region21
    $region20: #{net_forward.3} parent=1 // pred_region
      %s69 = ssub.s32 16, 16
      %70 = vsyncadd [#allocation9], %s69
      %s72 = sshll.u32 [#allocation10], 4
      %s73 = int_to_ptr.vmem [resolvable:$true] %s72
      %75 = dma.hbm_to_vmem [thread:$0]  %s4, 16, %s73, [#allocation9]
    $region21: #{net_forward.3} parent=1 // pred_fallthru
      _
    // Predicated region
    $region22: #{net_forward.3} parent=1 // pred_check
      _
    $region23: #{net_forward.3} parent=1 // pred_check_branch
      %77 = sbr.rel (0) target = $region25
    $region24: #{net_forward.3} parent=1 // pred_region
      %s79 = ssub.s32 1920, 1920
      %80 = vsyncadd [#allocation12], %s79
      %s81 = sshll.u32 [#allocation11], 4
      %s82 = int_to_ptr.vmem [resolvable:$true] %s81
      %87 = dma.hbm_to_vmem [thread:$0]  %s5, 1920, %s82, [#allocation12], 128, 128, 8
    $region25: #{net_forward.3} parent=1 // pred_fallthru
      _
    // Predicated region
    $region26: #{net_forward.3} parent=1 // pred_check
      _
    $region27: #{net_forward.3} parent=1 // pred_check_branch
      %89 = sbr.rel (0) target = $region29
    $region28: #{net_forward.3} parent=1 // pred_region
      %s91 = ssub.s32 16, 16
      %92 = vsyncadd [#allocation12], %s91
      %s94 = sshll.u32 [#allocation13], 4
      %s95 = int_to_ptr.vmem [resolvable:$true] %s94
      %97 = dma.hbm_to_vmem [thread:$0]  %s6, 16, %s95, [#allocation12]
    $region29: #{net_forward.3} parent=1 // pred_fallthru
      _
    // Predicated region
    $region30: #{net_forward.3} parent=1 // pred_check
      _
    $region31: #{net_forward.3} parent=1 // pred_check_branch
      %99 = sbr.rel (0) target = $region33
    $region32: #{net_forward.3} parent=1 // pred_region
      %s101 = ssub.s32 1408, 1408
      %102 = vsyncadd [#allocation15], %s101
      %s103 = sshll.u32 [#allocation14], 4
      %s104 = int_to_ptr.vmem [resolvable:$true] %s103
      %109 = dma.hbm_to_vmem [thread:$0]  %s7, 1408, %s104, [#allocation15], 128, 128, 8
    $region33: #{net_forward.3} parent=1 // pred_fallthru
      _
    // Predicated region
    $region34: #{net_forward.3} parent=1 // pred_check
      _
    $region35: #{net_forward.3} parent=1 // pred_check_branch
      %111 = sbr.rel (0) target = $region37
    $region36: #{net_forward.3} parent=1 // pred_region
      %s113 = ssub.s32 16, 16
      %114 = vsyncadd [#allocation15], %s113
      %s116 = sshll.u32 [#allocation16], 4
      %s117 = int_to_ptr.vmem [resolvable:$true] %s116
      %119 = dma.hbm_to_vmem [thread:$0]  %s8, 16, %s117, [#allocation15]
    $region37: #{net_forward.3} parent=1 // pred_fallthru
      _
    // Predicated region
    $region38: #{net_forward.3} parent=1 // pred_check
      _
    $region39: #{net_forward.3} parent=1 // pred_check_branch
      %121 = sbr.rel (0) target = $region41
    $region40: #{net_forward.3} parent=1 // pred_region
      %122 = dma.done [#allocation3], 4096
    $region41: #{net_forward.3} parent=1 // pred_fallthru
      _
    // Predicated region
    $region42: #{net_forward.3} parent=1 // pred_check
      _
    $region43: #{net_forward.3} parent=1 // pred_check_branch
      %124 = sbr.rel (0) target = $region45
    $region44: #{net_forward.3} parent=1 // pred_region
      %125 = dma.done [#allocation6], 2432
    $region45: #{net_forward.3} parent=1 // pred_fallthru
      _
    // Predicated region
    $region46: #{net_forward.3} parent=1 // pred_check
      _
    $region47: #{net_forward.3} parent=1 // pred_check_branch
      %127 = sbr.rel (0) target = $region49
    $region48: #{net_forward.3} parent=1 // pred_region
      %128 = dma.done [#allocation6], 16
    $region49: #{net_forward.3} parent=1 // pred_fallthru
      _
    // Predicated region
    $region50: #{net_forward.3} parent=1 // pred_check
      _
    $region51: #{net_forward.3} parent=1 // pred_check_branch
      %130 = sbr.rel (0) target = $region53
    $region52: #{net_forward.3} parent=1 // pred_region
      %131 = dma.done [#allocation9], 4096
    $region53: #{net_forward.3} parent=1 // pred_fallthru
      _
    // Predicated region
    $region54: #{net_forward.3} parent=1 // pred_check
      _
    $region55: #{net_forward.3} parent=1 // pred_check_branch
      %133 = sbr.rel (0) target = $region57
    $region56: #{net_forward.3} parent=1 // pred_region
      %134 = dma.done [#allocation9], 16
    $region57: #{net_forward.3} parent=1 // pred_fallthru
      _
    // Predicated region
    $region58: #{net_forward.3} parent=1 // pred_check
      _
    $region59: #{net_forward.3} parent=1 // pred_check_branch
      %136 = sbr.rel (0) target = $region61
    $region60: #{net_forward.3} parent=1 // pred_region
      %137 = dma.done [#allocation12], 1920
    $region61: #{net_forward.3} parent=1 // pred_fallthru
      _
    // Predicated region
    $region62: #{net_forward.3} parent=1 // pred_check
      _
    $region63: #{net_forward.3} parent=1 // pred_check_branch
      %139 = sbr.rel (0) target = $region65
    $region64: #{net_forward.3} parent=1 // pred_region
      %140 = dma.done [#allocation12], 16
    $region65: #{net_forward.3} parent=1 // pred_fallthru
      _
    // Predicated region
    $region66: #{net_forward.3} parent=1 // pred_check
      _
    $region67: #{net_forward.3} parent=1 // pred_check_branch
      %142 = sbr.rel (0) target = $region69
    $region68: #{net_forward.3} parent=1 // pred_region
      %143 = dma.done [#allocation15], 1408
    $region69: #{net_forward.3} parent=1 // pred_fallthru
      _
    // Predicated region
    $region70: #{net_forward.3} parent=1 // pred_check
      _
    $region71: #{net_forward.3} parent=1 // pred_check_branch
      %145 = sbr.rel (0) target = $region73
    $region72: #{net_forward.3} parent=1 // pred_region
      %146 = dma.done [#allocation15], 16
    $region73: #{net_forward.3} parent=1 // pred_fallthru
      _
    %v147 = vld [vmem:[#allocation2] sm:$0xff]
    %v148 = vld [vmem:[#allocation2 + $0x8] sm:$0xff]
    %v149 = vld [vmem:[#allocation2 + $0x10] sm:$0xff]
    %v150 = vld [vmem:[#allocation2 + $0x18] sm:$0xff]
    %v151 = vld [vmem:[#allocation2 + $0x20] sm:$0xff]
    %v152 = vld [vmem:[#allocation2 + $0x28] sm:$0xff]
    %v153 = vld [vmem:[#allocation2 + $0x30] sm:$0xff]
    %v154 = vld [vmem:[#allocation2 + $0x38] sm:$0xff]
    %v155 = vld [vmem:[#allocation2 + $0x40] sm:$0xff]
    %v156 = vld [vmem:[#allocation2 + $0x48] sm:$0xff]
    %v157 = vld [vmem:[#allocation2 + $0x50] sm:$0xff]
    %v158 = vld [vmem:[#allocation2 + $0x58] sm:$0xff]
    %v159 = vld [vmem:[#allocation2 + $0x60] sm:$0xff]
    %v160 = vld [vmem:[#allocation2 + $0x68] sm:$0xff]
    %v161 = vld [vmem:[#allocation2 + $0x70] sm:$0xff]
    %v162 = vld [vmem:[#allocation2 + $0x78] sm:$0xff]
    %v163 = vld [vmem:[#allocation2 + $0x80] sm:$0xff]
    %v164 = vld [vmem:[#allocation2 + $0x88] sm:$0xff]
    %v165 = vld [vmem:[#allocation2 + $0x90] sm:$0xff]
    %v166 = vld [vmem:[#allocation2 + $0x98] sm:$0xff]
    %v167 = vld [vmem:[#allocation2 + $0xa0] sm:$0xff]
    %v168 = vld [vmem:[#allocation2 + $0xa8] sm:$0xff]
    %v169 = vld [vmem:[#allocation2 + $0xb0] sm:$0xff]
    %v170 = vld [vmem:[#allocation2 + $0xb8] sm:$0xff]
    %v171 = vld [vmem:[#allocation2 + $0xc0] sm:$0xff]
    %v172 = vld [vmem:[#allocation2 + $0xc8] sm:$0xff]
    %v173 = vld [vmem:[#allocation2 + $0xd0] sm:$0xff]
    %v174 = vld [vmem:[#allocation2 + $0xd8] sm:$0xff]
    %v175 = vld [vmem:[#allocation2 + $0xe0] sm:$0xff]
    %v176 = vld [vmem:[#allocation2 + $0xe8] sm:$0xff]
    %v177 = vld [vmem:[#allocation2 + $0xf0] sm:$0xff]
    %v178 = vld [vmem:[#allocation2 + $0xf8] sm:$0xff]
    %v179 = vld [vmem:[#allocation5] sm:$0xff]
    %v180 = vld [vmem:[#allocation5 + $0x8] sm:$0xff]
    %v181 = vld [vmem:[#allocation5 + $0x10] sm:$0xff]
    %v182 = vld [vmem:[#allocation5 + $0x18] sm:$0xff]
    %v183 = vld [vmem:[#allocation5 + $0x20] sm:$0xff]
    %v184 = vld [vmem:[#allocation5 + $0x28] sm:$0xff]
    %v185 = vld [vmem:[#allocation5 + $0x30] sm:$0xff]
    %v186 = vld [vmem:[#allocation5 + $0x38] sm:$0xff]
    %v187 = vld [vmem:[#allocation5 + $0x40] sm:$0xff]
    %v188 = vld [vmem:[#allocation5 + $0x48] sm:$0xff]
    %v189 = vld [vmem:[#allocation5 + $0x50] sm:$0xff]
    %v190 = vld [vmem:[#allocation5 + $0x58] sm:$0xff]
    %v191 = vld [vmem:[#allocation5 + $0x60] sm:$0xff]
    %v192 = vld [vmem:[#allocation5 + $0x68] sm:$0xff]
    %v193 = vld [vmem:[#allocation5 + $0x70] sm:$0xff]
    %v194 = vld [vmem:[#allocation5 + $0x78] sm:$0xff]
    %v195 = vld [vmem:[#allocation5 + $0x80] sm:$0xff]
    %v196 = vld [vmem:[#allocation5 + $0x88] sm:$0xff]
    %v197 = vld [vmem:[#allocation5 + $0x90] sm:$0x3f]
    %vm198 = vcmask 179200
    %v200 = vsel %vm198, %v148, 0
    %v203 = vsel %vm198, %v150, 0
    %v206 = vsel %vm198, %v152, 0
    %v209 = vsel %vm198, %v154, 0
    %v212 = vsel %vm198, %v156, 0
    %v215 = vsel %vm198, %v158, 0
    %v218 = vsel %vm198, %v160, 0
    %v221 = vsel %vm198, %v162, 0
    %v224 = vsel %vm198, %v164, 0
    %v227 = vsel %vm198, %v166, 0
    %v230 = vsel %vm198, %v168, 0
    %v233 = vsel %vm198, %v170, 0
    %v236 = vsel %vm198, %v172, 0
    %v239 = vsel %vm198, %v174, 0
    %v242 = vsel %vm198, %v176, 0
    %v245 = vsel %vm198, %v178, 0
    %vm247 = vcmask 1045504
    %v249 = vsel %vm247, %v197, 0
    %251 = vmatprep.subr.mxu0 0.0
    %252 = vmatpush1.msra.mxu0 %v179
    %253 = vmatprep.subr.mxu0 0.0
    %254 = vmatpush1.msra.mxu0 %v180
    %255 = vmatprep.subr.mxu0 0.0
    %256 = vmatpush1.msra.mxu0 %v181
    %257 = vmatprep.subr.mxu0 0.0
    %258 = vmatpush1.msra.mxu0 %v182
    %259 = vmatprep.subr.mxu0 0.0
    %260 = vmatpush1.msra.mxu0 %v183
    %261 = vmatprep.subr.mxu0 0.0
    %262 = vmatpush1.msra.mxu0 %v184
    %263 = vmatprep.subr.mxu0 0.0
    %264 = vmatpush1.msra.mxu0 %v185
    %265 = vmatprep.subr.mxu0 0.0
    %266 = vmatpush1.msra.mxu0 %v186
    %267 = vmatprep.subr.mxu0 0.0
    %268 = vmatpush1.msra.mxu0 %v187
    %269 = vmatprep.subr.mxu0 0.0
    %270 = vmatpush1.msra.mxu0 %v188
    %271 = vmatprep.subr.mxu0 0.0
    %272 = vmatpush1.msra.mxu0 %v189
    %273 = vmatprep.subr.mxu0 0.0
    %274 = vmatpush1.msra.mxu0 %v190
    %275 = vmatprep.subr.mxu0 0.0
    %276 = vmatpush1.msra.mxu0 %v191
    %277 = vmatprep.subr.mxu0 0.0
    %278 = vmatpush1.msra.mxu0 %v192
    %279 = vmatprep.subr.mxu0 0.0
    %280 = vmatpush1.msra.mxu0 %v193
    %281 = vmatprep.subr.mxu0 0.0
    %282 = vmatpush1.msra.mxu0 %v194
    %283 = vmatprep.subr.mxu0 0.0
    %284 = vmatpush1.msra.mxu0 %v195
    %285 = vmatprep.subr.mxu0 0.0
    %286 = vmatpush1.msra.mxu0 %v196
    %287 = vmatprep.subr.mxu0 0.0
    %288 = vmatpush1.msra.mxu0 %v249
    %289 = vmatprep.subr.mxu0 0.0
    %290 = vmatpush1.msra.mxu0 0.0
    %291 = vmatprep.subr.mxu0 0.0
    %292 = vmatpush1.msra.mxu0 0.0
    %293 = vmatprep.subr.mxu0 0.0
    %294 = vmatpush1.msra.mxu0 0.0
    %295 = vmatprep.subr.mxu0 0.0
    %296 = vmatpush1.msra.mxu0 0.0
    %297 = vmatprep.subr.mxu0 0.0
    %298 = vmatpush1.msra.mxu0 0.0
    %299 = vmatprep.subr.mxu0 0.0
    %300 = vmatpush1.msra.mxu0 0.0
    %301 = vmatprep.subr.mxu0 0.0
    %302 = vmatpush1.msra.mxu0 0.0
    %303 = vmatprep.subr.mxu0 0.0
    %304 = vmatpush1.msra.mxu0 0.0
    %305 = vmatprep.subr.mxu0 0.0
    %306 = vmatpush1.msra.mxu0 0.0
    %307 = vmatprep.subr.mxu0 0.0
    %308 = vmatpush1.msra.mxu0 0.0
    %309 = vmatprep.subr.mxu0 0.0
    %310 = vmatpush1.msra.mxu0 0.0
    %311 = vmatprep.subr.mxu0 0.0
    %312 = vmatpush1.msra.mxu0 0.0
    %313 = vmatprep.subr.mxu0 0.0
    %314 = vmatpush1.msra.mxu0 0.0
    %315 = vmatprep.mubr.f32.mxu0 %v200
    %316 = vmatmul.mubr.f32.gmra.mrb[0].mxu0 %v147
    %v317 = vpop.f32.mrb[0].mxu0
    %v318 = vadd.f32 0.0, %v317
    %v319 = vpop.f32.mrb[0].mxu0
    %320 = vmatprep.mubr.f32.mxu0 %v203
    %321 = vmatmul.mubr.f32.gmra.mrb[0].mxu0 %v149
    %v322 = vpop.f32.mrb[0].mxu0
    %v323 = vadd.f32 0.0, %v322
    %v324 = vpop.f32.mrb[0].mxu0
    %325 = vmatprep.mubr.f32.mxu0 %v206
    %326 = vmatmul.mubr.f32.gmra.mrb[0].mxu0 %v151
    %v327 = vpop.f32.mrb[0].mxu0
    %v328 = vadd.f32 0.0, %v327
    %v329 = vpop.f32.mrb[0].mxu0
    %330 = vmatprep.mubr.f32.mxu0 %v209
    %331 = vmatmul.mubr.f32.gmra.mrb[0].mxu0 %v153
    %v332 = vpop.f32.mrb[0].mxu0
    %v333 = vadd.f32 0.0, %v332
    %v334 = vpop.f32.mrb[0].mxu0
    %335 = vmatprep.mubr.f32.mxu0 %v212
    %336 = vmatmul.mubr.f32.gmra.mrb[0].mxu0 %v155
    %v337 = vpop.f32.mrb[0].mxu0
    %v338 = vadd.f32 0.0, %v337
    %v339 = vpop.f32.mrb[0].mxu0
    %340 = vmatprep.mubr.f32.mxu0 %v215
    %341 = vmatmul.mubr.f32.gmra.mrb[0].mxu0 %v157
    %v342 = vpop.f32.mrb[0].mxu0
    %v343 = vadd.f32 0.0, %v342
    %v344 = vpop.f32.mrb[0].mxu0
    %345 = vmatprep.mubr.f32.mxu0 %v218
    %346 = vmatmul.mubr.f32.gmra.mrb[0].mxu0 %v159
    %v347 = vpop.f32.mrb[0].mxu0
    %v348 = vadd.f32 0.0, %v347
    %v349 = vpop.f32.mrb[0].mxu0
    %350 = vmatprep.mubr.f32.mxu0 %v221
    %351 = vmatmul.mubr.f32.gmra.mrb[0].mxu0 %v161
    %v352 = vpop.f32.mrb[0].mxu0
    %v353 = vadd.f32 0.0, %v352
    %v354 = vpop.f32.mrb[0].mxu0
    %355 = vmatprep.mubr.f32.mxu0 %v224
    %356 = vmatmul.mubr.f32.gmra.mrb[0].mxu0 %v163
    %v357 = vpop.f32.mrb[0].mxu0
    %v358 = vadd.f32 0.0, %v357
    %v359 = vpop.f32.mrb[0].mxu0
    %360 = vmatprep.mubr.f32.mxu0 %v227
    %361 = vmatmul.mubr.f32.gmra.mrb[0].mxu0 %v165
    %v362 = vpop.f32.mrb[0].mxu0
    %v363 = vadd.f32 0.0, %v362
    %v364 = vpop.f32.mrb[0].mxu0
    %365 = vmatprep.mubr.f32.mxu0 %v230
    %366 = vmatmul.mubr.f32.gmra.mrb[0].mxu0 %v167
    %v367 = vpop.f32.mrb[0].mxu0
    %v368 = vadd.f32 0.0, %v367
    %v369 = vpop.f32.mrb[0].mxu0
    %370 = vmatprep.mubr.f32.mxu0 %v233
    %371 = vmatmul.mubr.f32.gmra.mrb[0].mxu0 %v169
    %v372 = vpop.f32.mrb[0].mxu0
    %v373 = vadd.f32 0.0, %v372
    %v374 = vpop.f32.mrb[0].mxu0
    %375 = vmatprep.mubr.f32.mxu0 %v236
    %376 = vmatmul.mubr.f32.gmra.mrb[0].mxu0 %v171
    %v377 = vpop.f32.mrb[0].mxu0
    %v378 = vadd.f32 0.0, %v377
    %v379 = vpop.f32.mrb[0].mxu0
    %380 = vmatprep.mubr.f32.mxu0 %v239
    %381 = vmatmul.mubr.f32.gmra.mrb[0].mxu0 %v173
    %v382 = vpop.f32.mrb[0].mxu0
    %v383 = vadd.f32 0.0, %v382
    %v384 = vpop.f32.mrb[0].mxu0
    %385 = vmatprep.mubr.f32.mxu0 %v242
    %386 = vmatmul.mubr.f32.gmra.mrb[0].mxu0 %v175
    %v387 = vpop.f32.mrb[0].mxu0
    %v388 = vadd.f32 0.0, %v387
    %v389 = vpop.f32.mrb[0].mxu0
    %390 = vmatprep.mubr.f32.mxu0 %v245
    %391 = vmatmul.mubr.f32.gmra.mrb[0].mxu0 %v177
    %v392 = vpop.f32.mrb[0].mxu0
    %v393 = vadd.f32 0.0, %v392
    %v394 = vpop.f32.mrb[0].mxu0
    %395 = vdwg.mxu0
    %v396 = vmax.f32 %v318, %v338
    %v397 = vmax.f32 %v323, %v343
    %v398 = vmax.f32 %v328, %v348
    %v399 = vmax.f32 %v333, %v353
    %v400 = vmax.f32 %v358, %v378
    %v401 = vmax.f32 %v363, %v383
    %v402 = vmax.f32 %v368, %v388
    %v403 = vmax.f32 %v373, %v393
    %v404 = vmax.f32 %v396, %v400
    %v405 = vmax.f32 %v397, %v401
    %v406 = vmax.f32 %v398, %v402
    %v407 = vmax.f32 %v399, %v403
    %v408 = vld [vmem:[#allocation7] sm:$0x1]
    %v410 = vlaneseq
    %v411 = vshrl.u32 %v410, 7
    %v412 = vsub.s32 0, %v411
    %v413 = vrot.slane %v408, %v412
    %v415 = vadd.f32 %v404, %v413
    %v416 = vadd.f32 %v405, %v413
    %v417 = vadd.f32 %v406, %v413
    %v418 = vadd.f32 %v407, %v413
    %v419 = vmax.f32 %v415, 0.0
    %v420 = vmax.f32 %v416, 0.0
    %v421 = vmax.f32 %v417, 0.0
    %v422 = vmax.f32 %v418, 0.0
    %v424 = vrot.slane %v419, 2
    %425 = vrot.lane.b32.xlu0 %v424, 16
    %v426 = vpop.permute.xlu0 %425
    %v428 = vrot.slane %v419, 4
    %429 = vrot.lane.b32.xlu0 %v428, 32
    %v430 = vpop.permute.xlu0 %429
    %v432 = vrot.slane %v419, 6
    %433 = vrot.lane.b32.xlu0 %v432, 48
    %v434 = vpop.permute.xlu0 %433
    %437 = vrot.lane.b32.xlu0 %v420, 64
    %v438 = vpop.permute.xlu0 %437
    %v440 = vrot.slane %v420, 2
    %441 = vrot.lane.b32.xlu0 %v440, 80
    %v442 = vpop.permute.xlu0 %441
    %v444 = vrot.slane %v420, 4
    %445 = vrot.lane.b32.xlu0 %v444, 96
    %v446 = vpop.permute.xlu0 %445
    %v448 = vrot.slane %v420, 6
    %449 = vrot.lane.b32.xlu0 %v448, 112
    %v450 = vpop.permute.xlu0 %449
    %v453 = vrot.slane %v421, 2
    %454 = vrot.lane.b32.xlu0 %v453, 16
    %v455 = vpop.permute.xlu0 %454
    %v457 = vrot.slane %v421, 4
    %458 = vrot.lane.b32.xlu0 %v457, 32
    %v459 = vpop.permute.xlu0 %458
    %v461 = vrot.slane %v421, 6
    %462 = vrot.lane.b32.xlu0 %v461, 48
    %v463 = vpop.permute.xlu0 %462
    %466 = vrot.lane.b32.xlu0 %v422, 64
    %v467 = vpop.permute.xlu0 %466
    %v469 = vrot.slane %v422, 2
    %470 = vrot.lane.b32.xlu0 %v469, 80
    %v471 = vpop.permute.xlu0 %470
    %v473 = vrot.slane %v422, 4
    %474 = vrot.lane.b32.xlu0 %v473, 96
    %v475 = vpop.permute.xlu0 %474
    %v477 = vrot.slane %v422, 6
    %478 = vrot.lane.b32.xlu0 %v477, 112
    %v479 = vpop.permute.xlu0 %478
    %vm481 = vcmask 130048
    %v482 = vsel %vm481, %v419, %v426
    %vm483 = vcmask 261120
    %v484 = vsel %vm483, %v482, %v430
    %vm485 = vcmask 392192
    %v486 = vsel %vm485, %v484, %v434
    %vm487 = vcmask 523264
    %v488 = vsel %vm487, %v486, %v438
    %vm489 = vcmask 654336
    %v490 = vsel %vm489, %v488, %v442
    %vm491 = vcmask 785408
    %v492 = vsel %vm491, %v490, %v446
    %vm493 = vcmask 916480
    %v494 = vsel %vm493, %v492, %v450
    %v495 = vsel %vm481, %v421, %v455
    %v496 = vsel %vm483, %v495, %v459
    %v497 = vsel %vm485, %v496, %v463
    %v498 = vsel %vm487, %v497, %v467
    %v499 = vsel %vm489, %v498, %v471
    %v500 = vsel %vm491, %v499, %v475
    %v501 = vsel %vm493, %v500, %v479
    %v502 = vld [vmem:[#allocation8] sm:$0xff]
    %v503 = vld [vmem:[#allocation8 + $0x8] sm:$0xff]
    %v504 = vld [vmem:[#allocation8 + $0x10] sm:$0xff]
    %v505 = vld [vmem:[#allocation8 + $0x18] sm:$0xff]
    %v506 = vld [vmem:[#allocation8 + $0x20] sm:$0xff]
    %v507 = vld [vmem:[#allocation8 + $0x28] sm:$0xff]
    %v508 = vld [vmem:[#allocation8 + $0x30] sm:$0xff]
    %v509 = vld [vmem:[#allocation8 + $0x38] sm:$0xff]
    %v510 = vld [vmem:[#allocation8 + $0x40] sm:$0xff]
    %v511 = vld [vmem:[#allocation8 + $0x48] sm:$0xff]
    %v512 = vld [vmem:[#allocation8 + $0x50] sm:$0xff]
    %v513 = vld [vmem:[#allocation8 + $0x58] sm:$0xff]
    %v514 = vld [vmem:[#allocation8 + $0x60] sm:$0xff]
    %v515 = vld [vmem:[#allocation8 + $0x68] sm:$0xff]
    %v516 = vld [vmem:[#allocation8 + $0x70] sm:$0xff]
    %v517 = vld [vmem:[#allocation8 + $0x78] sm:$0xff]
    %v518 = vld [vmem:[#allocation8 + $0x80] sm:$0xff]
    %v519 = vld [vmem:[#allocation8 + $0x88] sm:$0xff]
    %v520 = vld [vmem:[#allocation8 + $0x90] sm:$0xff]
    %v521 = vld [vmem:[#allocation8 + $0x98] sm:$0xff]
    %v522 = vld [vmem:[#allocation8 + $0xa0] sm:$0xff]
    %v523 = vld [vmem:[#allocation8 + $0xa8] sm:$0xff]
    %v524 = vld [vmem:[#allocation8 + $0xb0] sm:$0xff]
    %v525 = vld [vmem:[#allocation8 + $0xb8] sm:$0xff]
    %v526 = vld [vmem:[#allocation8 + $0xc0] sm:$0xff]
    %v527 = vld [vmem:[#allocation8 + $0xc8] sm:$0xff]
    %v528 = vld [vmem:[#allocation8 + $0xd0] sm:$0xff]
    %v529 = vld [vmem:[#allocation8 + $0xd8] sm:$0xff]
    %v530 = vld [vmem:[#allocation8 + $0xe0] sm:$0xff]
    %v531 = vld [vmem:[#allocation8 + $0xe8] sm:$0xff]
    %v532 = vld [vmem:[#allocation8 + $0xf0] sm:$0xff]
    %v533 = vld [vmem:[#allocation8 + $0xf8] sm:$0xff]
    %v534 = vld [vmem:[#allocation10] sm:$0x1]
    %v536 = vlaneseq
    %v537 = vshrl.u32 %v536, 7
    %v538 = vsub.s32 0, %v537
    %v539 = vrot.slane %v534, %v538
    %541 = vmatprep.subr.mxu0 0.0
    %542 = vmatpush1.msra.mxu0 %v502
    %543 = vmatprep.subr.mxu0 0.0
    %544 = vmatpush1.msra.mxu0 %v503
    %545 = vmatprep.subr.mxu0 0.0
    %546 = vmatpush1.msra.mxu0 %v504
    %547 = vmatprep.subr.mxu0 0.0
    %548 = vmatpush1.msra.mxu0 %v505
    %549 = vmatprep.subr.mxu0 0.0
    %550 = vmatpush1.msra.mxu0 %v506
    %551 = vmatprep.subr.mxu0 0.0
    %552 = vmatpush1.msra.mxu0 %v507
    %553 = vmatprep.subr.mxu0 0.0
    %554 = vmatpush1.msra.mxu0 %v508
    %555 = vmatprep.subr.mxu0 0.0
    %556 = vmatpush1.msra.mxu0 %v509
    %557 = vmatprep.subr.mxu0 0.0
    %558 = vmatpush1.msra.mxu0 %v510
    %559 = vmatprep.subr.mxu0 0.0
    %560 = vmatpush1.msra.mxu0 %v511
    %561 = vmatprep.subr.mxu0 0.0
    %562 = vmatpush1.msra.mxu0 %v512
    %563 = vmatprep.subr.mxu0 0.0
    %564 = vmatpush1.msra.mxu0 %v513
    %565 = vmatprep.subr.mxu0 0.0
    %566 = vmatpush1.msra.mxu0 %v514
    %567 = vmatprep.subr.mxu0 0.0
    %568 = vmatpush1.msra.mxu0 %v515
    %569 = vmatprep.subr.mxu0 0.0
    %570 = vmatpush1.msra.mxu0 %v516
    %571 = vmatprep.subr.mxu0 0.0
    %572 = vmatpush1.msra.mxu0 %v517
    %573 = vmatprep.subr.mxu0 0.0
    %574 = vmatpush1.msra.mxu0 %v518
    %575 = vmatprep.subr.mxu0 0.0
    %576 = vmatpush1.msra.mxu0 %v519
    %577 = vmatprep.subr.mxu0 0.0
    %578 = vmatpush1.msra.mxu0 %v520
    %579 = vmatprep.subr.mxu0 0.0
    %580 = vmatpush1.msra.mxu0 %v521
    %581 = vmatprep.subr.mxu0 0.0
    %582 = vmatpush1.msra.mxu0 %v522
    %583 = vmatprep.subr.mxu0 0.0
    %584 = vmatpush1.msra.mxu0 %v523
    %585 = vmatprep.subr.mxu0 0.0
    %586 = vmatpush1.msra.mxu0 %v524
    %587 = vmatprep.subr.mxu0 0.0
    %588 = vmatpush1.msra.mxu0 %v525
    %589 = vmatprep.subr.mxu0 0.0
    %590 = vmatpush1.msra.mxu0 %v526
    %591 = vmatprep.subr.mxu0 0.0
    %592 = vmatpush1.msra.mxu0 %v527
    %593 = vmatprep.subr.mxu0 0.0
    %594 = vmatpush1.msra.mxu0 %v528
    %595 = vmatprep.subr.mxu0 0.0
    %596 = vmatpush1.msra.mxu0 %v529
    %597 = vmatprep.subr.mxu0 0.0
    %598 = vmatpush1.msra.mxu0 %v530
    %599 = vmatprep.subr.mxu0 0.0
    %600 = vmatpush1.msra.mxu0 %v531
    %601 = vmatprep.subr.mxu0 0.0
    %602 = vmatpush1.msra.mxu0 %v532
    %603 = vmatprep.subr.mxu0 0.0
    %604 = vmatpush1.msra.mxu0 %v533
    %605 = vmatprep.mubr.f32.mxu0 %v501
    %606 = vmatmul.mubr.f32.gmra.mrb[0].mxu0 %v494
    %v607 = vpop.f32.mrb[0].mxu0
    %v608 = vadd.f32 %v539, %v607
    %v609 = vpop.f32.mrb[0].mxu0
    %610 = vdwg.mxu0
    %v611 = vmax.f32 %v608, 0.0
    %v612 = vld [vmem:[#allocation11] sm:$0xff]
    %v613 = vld [vmem:[#allocation11 + $0x8] sm:$0xff]
    %v614 = vld [vmem:[#allocation11 + $0x10] sm:$0xff]
    %v615 = vld [vmem:[#allocation11 + $0x18] sm:$0xff]
    %v616 = vld [vmem:[#allocation11 + $0x20] sm:$0xff]
    %v617 = vld [vmem:[#allocation11 + $0x28] sm:$0xff]
    %v618 = vld [vmem:[#allocation11 + $0x30] sm:$0xff]
    %v619 = vld [vmem:[#allocation11 + $0x38] sm:$0xff]
    %v620 = vld [vmem:[#allocation11 + $0x40] sm:$0xff]
    %v621 = vld [vmem:[#allocation11 + $0x48] sm:$0xff]
    %v622 = vld [vmem:[#allocation11 + $0x50] sm:$0xff]
    %v623 = vld [vmem:[#allocation11 + $0x58] sm:$0xff]
    %v624 = vld [vmem:[#allocation11 + $0x60] sm:$0xff]
    %v625 = vld [vmem:[#allocation11 + $0x68] sm:$0xff]
    %v626 = vld [vmem:[#allocation11 + $0x70] sm:$0xff]
    %v627 = vld [vmem:[#allocation13] sm:$0x1]
    %v629 = vlaneseq
    %v630 = vshrl.u32 %v629, 7
    %v631 = vsub.s32 0, %v630
    %v632 = vrot.slane %v627, %v631
    %vm634 = vcmask 982016
    %v636 = vsel %vm634, %v611, 0
    %638 = vmatprep.subr.mxu0 0.0
    %639 = vmatpush1.msra.mxu0 %v612
    %640 = vmatprep.subr.mxu0 0.0
    %641 = vmatpush1.msra.mxu0 %v613
    %642 = vmatprep.subr.mxu0 0.0
    %643 = vmatpush1.msra.mxu0 %v614
    %644 = vmatprep.subr.mxu0 0.0
    %645 = vmatpush1.msra.mxu0 %v615
    %646 = vmatprep.subr.mxu0 0.0
    %647 = vmatpush1.msra.mxu0 %v616
    %648 = vmatprep.subr.mxu0 0.0
    %649 = vmatpush1.msra.mxu0 %v617
    %650 = vmatprep.subr.mxu0 0.0
    %651 = vmatpush1.msra.mxu0 %v618
    %652 = vmatprep.subr.mxu0 0.0
    %653 = vmatpush1.msra.mxu0 %v619
    %654 = vmatprep.subr.mxu0 0.0
    %655 = vmatpush1.msra.mxu0 %v620
    %656 = vmatprep.subr.mxu0 0.0
    %657 = vmatpush1.msra.mxu0 %v621
    %658 = vmatprep.subr.mxu0 0.0
    %659 = vmatpush1.msra.mxu0 %v622
    %660 = vmatprep.subr.mxu0 0.0
    %661 = vmatpush1.msra.mxu0 %v623
    %662 = vmatprep.subr.mxu0 0.0
    %663 = vmatpush1.msra.mxu0 %v624
    %664 = vmatprep.subr.mxu0 0.0
    %665 = vmatpush1.msra.mxu0 %v625
    %666 = vmatprep.subr.mxu0 0.0
    %667 = vmatpush1.msra.mxu0 %v626
    %668 = vmatprep.subr.mxu0 0.0
    %669 = vmatpush1.msra.mxu0 0.0
    %670 = vmatprep.subr.mxu0 0.0
    %671 = vmatpush1.msra.mxu0 0.0
    %672 = vmatprep.subr.mxu0 0.0
    %673 = vmatpush1.msra.mxu0 0.0
    %674 = vmatprep.subr.mxu0 0.0
    %675 = vmatpush1.msra.mxu0 0.0
    %676 = vmatprep.subr.mxu0 0.0
    %677 = vmatpush1.msra.mxu0 0.0
    %678 = vmatprep.subr.mxu0 0.0
    %679 = vmatpush1.msra.mxu0 0.0
    %680 = vmatprep.subr.mxu0 0.0
    %681 = vmatpush1.msra.mxu0 0.0
    %682 = vmatprep.subr.mxu0 0.0
    %683 = vmatpush1.msra.mxu0 0.0
    %684 = vmatprep.subr.mxu0 0.0
    %685 = vmatpush1.msra.mxu0 0.0
    %686 = vmatprep.subr.mxu0 0.0
    %687 = vmatpush1.msra.mxu0 0.0
    %688 = vmatprep.subr.mxu0 0.0
    %689 = vmatpush1.msra.mxu0 0.0
    %690 = vmatprep.subr.mxu0 0.0
    %691 = vmatpush1.msra.mxu0 0.0
    %692 = vmatprep.subr.mxu0 0.0
    %693 = vmatpush1.msra.mxu0 0.0
    %694 = vmatprep.subr.mxu0 0.0
    %695 = vmatpush1.msra.mxu0 0.0
    %696 = vmatprep.subr.mxu0 0.0
    %697 = vmatpush1.msra.mxu0 0.0
    %698 = vmatprep.subr.mxu0 0.0
    %699 = vmatpush1.msra.mxu0 0.0
    %700 = vmatprep.subr.mxu0 0.0
    %701 = vmatpush1.msra.mxu0 0.0
    %702 = vmatprep.mubr.f32.mxu0 0.0
    %703 = vmatmul.mubr.f32.gmra.mrb[0].mxu0 %v636
    %v704 = vpop.f32.mrb[0].mxu0
    %v705 = vadd.f32 %v632, %v704
    %v706 = vpop.f32.mrb[0].mxu0
    %707 = vdwg.mxu0
    %v708 = vmax.f32 %v705, 0.0
    %v709 = vld [vmem:[#allocation14] sm:$0xff]
    %v710 = vld [vmem:[#allocation14 + $0x8] sm:$0xff]
    %v711 = vld [vmem:[#allocation14 + $0x10] sm:$0xff]
    %v712 = vld [vmem:[#allocation14 + $0x18] sm:$0xff]
    %v713 = vld [vmem:[#allocation14 + $0x20] sm:$0xff]
    %v714 = vld [vmem:[#allocation14 + $0x28] sm:$0xff]
    %v715 = vld [vmem:[#allocation14 + $0x30] sm:$0xff]
    %v716 = vld [vmem:[#allocation14 + $0x38] sm:$0xff]
    %v717 = vld [vmem:[#allocation14 + $0x40] sm:$0xff]
    %v718 = vld [vmem:[#allocation14 + $0x48] sm:$0xff]
    %v719 = vld [vmem:[#allocation14 + $0x50] sm:$0xf]
    %v720 = vld [vmem:[#allocation16] sm:$0x1]
    %v722 = vlaneseq
    %v723 = vshrl.u32 %v722, 7
    %v724 = vsub.s32 0, %v723
    %v725 = vrot.slane %v720, %v724
    %vm727 = vcmask 687104
    %v729 = vsel %vm727, %v708, 0
    %vm731 = vcmask 1043456
    %v733 = vsel %vm731, %v719, 0
    %735 = vmatprep.subr.mxu0 0.0
    %736 = vmatpush1.msra.mxu0 %v709
    %737 = vmatprep.subr.mxu0 0.0
    %738 = vmatpush1.msra.mxu0 %v710
    %739 = vmatprep.subr.mxu0 0.0
    %740 = vmatpush1.msra.mxu0 %v711
    %741 = vmatprep.subr.mxu0 0.0
    %742 = vmatpush1.msra.mxu0 %v712
    %743 = vmatprep.subr.mxu0 0.0
    %744 = vmatpush1.msra.mxu0 %v713
    %745 = vmatprep.subr.mxu0 0.0
    %746 = vmatpush1.msra.mxu0 %v714
    %747 = vmatprep.subr.mxu0 0.0
    %748 = vmatpush1.msra.mxu0 %v715
    %749 = vmatprep.subr.mxu0 0.0
    %750 = vmatpush1.msra.mxu0 %v716
    %751 = vmatprep.subr.mxu0 0.0
    %752 = vmatpush1.msra.mxu0 %v717
    %753 = vmatprep.subr.mxu0 0.0
    %754 = vmatpush1.msra.mxu0 %v718
    %755 = vmatprep.subr.mxu0 0.0
    %756 = vmatpush1.msra.mxu0 %v733
    %757 = vmatprep.subr.mxu0 0.0
    %758 = vmatpush1.msra.mxu0 0.0
    %759 = vmatprep.subr.mxu0 0.0
    %760 = vmatpush1.msra.mxu0 0.0
    %761 = vmatprep.subr.mxu0 0.0
    %762 = vmatpush1.msra.mxu0 0.0
    %763 = vmatprep.subr.mxu0 0.0
    %764 = vmatpush1.msra.mxu0 0.0
    %765 = vmatprep.subr.mxu0 0.0
    %766 = vmatpush1.msra.mxu0 0.0
    %767 = vmatprep.subr.mxu0 0.0
    %768 = vmatpush1.msra.mxu0 0.0
    %769 = vmatprep.subr.mxu0 0.0
    %770 = vmatpush1.msra.mxu0 0.0
    %771 = vmatprep.subr.mxu0 0.0
    %772 = vmatpush1.msra.mxu0 0.0
    %773 = vmatprep.subr.mxu0 0.0
    %774 = vmatpush1.msra.mxu0 0.0
    %775 = vmatprep.subr.mxu0 0.0
    %776 = vmatpush1.msra.mxu0 0.0
    %777 = vmatprep.subr.mxu0 0.0
    %778 = vmatpush1.msra.mxu0 0.0
    %779 = vmatprep.subr.mxu0 0.0
    %780 = vmatpush1.msra.mxu0 0.0
    %781 = vmatprep.subr.mxu0 0.0
    %782 = vmatpush1.msra.mxu0 0.0
    %783 = vmatprep.subr.mxu0 0.0
    %784 = vmatpush1.msra.mxu0 0.0
    %785 = vmatprep.subr.mxu0 0.0
    %786 = vmatpush1.msra.mxu0 0.0
    %787 = vmatprep.subr.mxu0 0.0
    %788 = vmatpush1.msra.mxu0 0.0
    %789 = vmatprep.subr.mxu0 0.0
    %790 = vmatpush1.msra.mxu0 0.0
    %791 = vmatprep.subr.mxu0 0.0
    %792 = vmatpush1.msra.mxu0 0.0
    %793 = vmatprep.subr.mxu0 0.0
    %794 = vmatpush1.msra.mxu0 0.0
    %795 = vmatprep.subr.mxu0 0.0
    %796 = vmatpush1.msra.mxu0 0.0
    %797 = vmatprep.subr.mxu0 0.0
    %798 = vmatpush1.msra.mxu0 0.0
    %799 = vmatprep.mubr.f32.mxu0 0.0
    %800 = vmatmul.mubr.f32.gmra.mrb[0].mxu0 %v729
    %v801 = vpop.f32.mrb[0].mxu0
    %v802 = vadd.f32 %v725, %v801
    %v803 = vpop.f32.mrb[0].mxu0
    %804 = vdwg.mxu0
    %vm805 = vcmask 74752
    %806 = vst.msk [vmem:[#allocation17] sm:$0x3] %vm805, %v802
    // Predicated region
    $region74: #{net_forward.3} parent=1 // pred_check
      _
    $region75: #{net_forward.3} parent=1 // pred_check_branch
      %808 = sbr.rel (0) target = $region77
    $region76: #{net_forward.3} parent=1 // pred_region
      %s810 = ssub.s32 32, 32
      %811 = vsyncadd [#allocation4], %s810
      %s813 = sshll.u32 [#allocation17], 4
      %s814 = int_to_ptr.vmem [resolvable:$true] %s813
      %816 = dma.vmem_to_hbm [thread:$0]  %s814, 32, %s9, [#allocation4]
    $region77: #{net_forward.3} parent=1 // pred_fallthru
      _
    // Predicated region
    $region78: #{net_forward.3} parent=1 // pred_check
      _
    $region79: #{net_forward.3} parent=1 // pred_check_branch
      %818 = sbr.rel (0) target = $region81
    $region80: #{net_forward.3} parent=1 // pred_region
      %819 = dma.done [#allocation4], 32
    $region81: #{net_forward.3} parent=1 // pred_fallthru
      _
    %820 = vsyncpa [#allocation3], 1
    %821 = vsyncpa [#allocation6], 1
    %822 = vsyncpa [#allocation9], 1
    %823 = vsyncpa [#allocation12], 1
    %824 = vsyncpa [#allocation15], 1
    %825 = vsyncpa [#allocation4], 1

</llo_original>
